<compile_context>
chip_gen: v7x
topology: tpu7x:2x2x1
jax: 0.10.0
libtpu: 0.0.40
codegen_flags: <defaults>
</compile_context>

<pallas_src>
import numpy as np
import jax
import jax.numpy as jnp
from jax.experimental import pallas as pl
from jax.experimental.pallas import tpu as pltpu

BN_EPS = 1e-5
GIN_EPS = 0.0   # init_eps = 0, learn_eps = False

HP = 128        # hidden dim padded to full lane width
CP = 128        # n_classes padded to full lane width
GP = 8          # graph count padded to one sublane group


# ---------------------------------------------------------------------------
# Fused Pallas kernel: whole forward pass in one call.
# ---------------------------------------------------------------------------
def make_fused_kernel(n_layers):
    def fused_kernel(a_ref, p_ref, h0_ref, emb_w_ref, emb_b_ref,
                     w1_ref, b1_ref, w2_ref, b2_ref, s3_ref, t3_ref,
                     pw_ref, pb_ref, score_ref):
        A = a_ref[...]            # [N, N]   dense adjacency (sum aggregation)
        P = p_ref[...]            # [GP, N]  graph-membership indicator (SumPool)

        # Embedding linear (hidden already padded to HP lanes).
        h = (jnp.dot(h0_ref[...], emb_w_ref[...],
                     preferred_element_type=jnp.float32) + emb_b_ref[...])

        def readout(h_cur, i):
            pooled = jnp.dot(P, h_cur, preferred_element_type=jnp.float32)
            return (jnp.dot(pooled, pw_ref[i],
                            preferred_element_type=jnp.float32) + pb_ref[i])

        score = readout(h, 0)

        for i in range(n_layers):          # L is a compile-time constant
            neigh = jnp.dot(A, h, preferred_element_type=jnp.float32)
            z = h + neigh                                          # eps == 0
            # MLP layer 1: Linear (BN1 folded in) -> ReLU
            z = jnp.maximum(
                jnp.dot(z, w1_ref[i], preferred_element_type=jnp.float32)
                + b1_ref[i], 0.0)
            # MLP layer 2 + ApplyNodeFunc BN2 (folded) -> ReLU
            z = jnp.maximum(
                jnp.dot(z, w2_ref[i], preferred_element_type=jnp.float32)
                + b2_ref[i], 0.0)
            # GINLayer BN3 as scale/shift -> ReLU
            z = jnp.maximum(z * s3_ref[i] + t3_ref[i], 0.0)
            # residual (dropout is identity in eval mode)
            h = h + z
            score = score + readout(h, i + 1)

        score_ref[...] = score
    return fused_kernel


# ---------------------------------------------------------------------------
# Parameter folding / padding (done once in JAX, outside the kernel).
# ---------------------------------------------------------------------------
def _pad_to(x, shape):
    return jnp.pad(x, [(0, t - s) for s, t in zip(x.shape, shape)])


def _fold_bn_into_linear(w, b, bn):
    # BN(xW + b) = x(W*s) + (b - mean)*s + beta, with s = gamma / sqrt(var+eps)
    gamma, beta, mean, var = bn[0], bn[1], bn[2], bn[3]
    scale = gamma / jnp.sqrt(var + BN_EPS)
    return w * scale[None, :], (b - mean[None, :]) * scale[None, :] + beta[None, :]


def prepare_fused_params(params):
    emb_w = _pad_to(params["emb_w"], (params["emb_w"].shape[0], HP))
    emb_b = _pad_to(params["emb_b"], (1, HP))

    w1s, b1s, w2s, b2s, s3s, t3s = [], [], [], [], [], []
    for lp in params["gin_layers"]:
        w1, b1 = _fold_bn_into_linear(lp["w1"], lp["b1"], lp["bn1"])
        w2, b2 = _fold_bn_into_linear(lp["w2"], lp["b2"], lp["bn2"])
        bn3 = lp["bn3"]
        s3 = bn3[0] / jnp.sqrt(bn3[3] + BN_EPS)
        t3 = bn3[1] - bn3[2] * s3
        w1s.append(_pad_to(w1, (HP, HP)))
        b1s.append(_pad_to(b1, (1, HP)))
        w2s.append(_pad_to(w2, (HP, HP)))
        b2s.append(_pad_to(b2, (1, HP)))
        s3s.append(_pad_to(s3[None, :], (1, HP)))
        t3s.append(_pad_to(t3[None, :], (1, HP)))

    pw = [_pad_to(w, (HP, CP)) for w in params["pred_w"]]
    pb = [_pad_to(b, (1, CP)) for b in params["pred_b"]]

    return dict(emb_w=emb_w, emb_b=emb_b,
                w1=jnp.stack(w1s), b1=jnp.stack(b1s),
                w2=jnp.stack(w2s), b2=jnp.stack(b2s),
                s3=jnp.stack(s3s), t3=jnp.stack(t3s),
                pw=jnp.stack(pw), pb=jnp.stack(pb))


# ---------------------------------------------------------------------------
# Wrapper: single pallas_call, full-array VMEM-resident blocks.
# Problem sizes here are tiny (N=24, weights a few hundred KB) so one grid
# step with whole-array blocks is optimal; for large N the A@h aggregation
# would be row/contraction tiled instead.
# ---------------------------------------------------------------------------
def _full_spec(shape):
    nd = len(shape)
    return pl.BlockSpec(shape, lambda i, _nd=nd: (0,) * _nd)


def gin_net_forward(A, P, h0, params):
    fp = prepare_fused_params(params)
    n_layers = fp["w1"].shape[0]
    n_classes = params["pred_w"][0].shape[1]
    G = P.shape[0]

    P_pad = _pad_to(P, (GP, P.shape[1]))
    args = (A, P_pad, h0, fp["emb_w"], fp["emb_b"],
            fp["w1"], fp["b1"], fp["w2"], fp["b2"], fp["s3"], fp["t3"],
            fp["pw"], fp["pb"])

    out = pl.pallas_call(
        make_fused_kernel(n_layers),
        grid=(1,),
        in_specs=[_full_spec(x.shape) for x in args],
        out_specs=_full_spec((GP, CP)),
        out_shape=jax.ShapeDtypeStruct((GP, CP), jnp.float32),
        compiler_params=pltpu.CompilerParams(
            dimension_semantics=("arbitrary",)),
    )(*args)
    return out[:G, :n_classes]


# ---------------------------------------------------------------------------
# Pure-JAX reference (un-fused, un-padded, original BN evaluation).
# ---------------------------------------------------------------------------
def ref_forward(A, P, h, params):
    def bn(x, p):
        return p[0] * (x - p[2]) / jnp.sqrt(p[3] + BN_EPS) + p[1]

    h = h @ params["emb_w"] + params["emb_b"]
    hidden_rep = [h]
    for lp in params["gin_layers"]:
        h_in = h
        z = (1.0 + GIN_EPS) * h + A @ h
        z = jnp.maximum(bn(z @ lp["w1"] + lp["b1"], lp["bn1"]), 0.0)
        z = z @ lp["w2"] + lp["b2"]
        z = jnp.maximum(bn(z, lp["bn2"]), 0.0)
        z = jnp.maximum(bn(z, lp["bn3"]), 0.0)
        h = h_in + z
        hidden_rep.append(h)
    score = 0.0
    for i, hr in enumerate(hidden_rep):
        pooled = P @ hr
        score = score + (pooled @ params["pred_w"][i] + params["pred_b"][i])
    return score


# ---------------------------------------------------------------------------
# Deterministic parameter / input construction
# ---------------------------------------------------------------------------
def make_params(key, in_dim, hidden_dim, n_classes, n_layers):
    keys = iter(jax.random.split(key, 64))

    def lin(kin, kout):
        w = 0.1 * jax.random.normal(next(keys), (kin, kout), jnp.float32)
        b = 0.01 * jax.random.normal(next(keys), (1, kout), jnp.float32)
        return w, b

    def bn(dim):
        gamma = 1.0 + 0.1 * jax.random.normal(next(keys), (dim,), jnp.float32)
        beta = 0.05 * jax.random.normal(next(keys), (dim,), jnp.float32)
        mean = 0.1 * jax.random.normal(next(keys), (dim,), jnp.float32)
        var = 0.5 + jax.random.uniform(next(keys), (dim,), jnp.float32)
        return jnp.stack([gamma, beta, mean, var], axis=0)  # [4, dim]

    emb_w, emb_b = lin(in_dim, hidden_dim)
    gin_layers = []
    for _ in range(n_layers):
        w1, b1 = lin(hidden_dim, hidden_dim)
        w2, b2 = lin(hidden_dim, hidden_dim)
        gin_layers.append(dict(w1=w1, b1=b1, bn1=bn(hidden_dim),
                               w2=w2, b2=b2, bn2=bn(hidden_dim),
                               bn3=bn(hidden_dim)))
    pred_w, pred_b = [], []
    for _ in range(n_layers + 1):
        w, b = lin(hidden_dim, n_classes)
        pred_w.append(w)
        pred_b.append(b)
    return dict(emb_w=emb_w, emb_b=emb_b, gin_layers=gin_layers,
                pred_w=pred_w, pred_b=pred_b)


if __name__ == "__main__":
    # Small synthetic batched graph: 2 graphs with 10 and 14 nodes.
    key = jax.random.PRNGKey(0)
    k_adj, k_feat, k_par = jax.random.split(key, 3)

    in_dim, hidden_dim, n_classes, n_layers = 16, 32, 6, 2
    graph_sizes = [10, 14]
    N = sum(graph_sizes)
    G = len(graph_sizes)

    # Block-diagonal symmetric adjacency (no edges across graphs).
    adj = np.zeros((N, N), np.float32)
    rng = np.random.default_rng(0)
    off = 0
    for sz in graph_sizes:
        blk = (rng.random((sz, sz)) < 0.4).astype(np.float32)
        blk = np.maximum(blk, blk.T)
        np.fill_diagonal(blk, 0.0)
        adj[off:off + sz, off:off + sz] = blk
        off += sz
    A = jnp.asarray(adj)

    # Sum-pooling indicator matrix [G, N].
    pool = np.zeros((G, N), np.float32)
    off = 0
    for g, sz in enumerate(graph_sizes):
        pool[g, off:off + sz] = 1.0
        off += sz
    P = jnp.asarray(pool)

    h = jax.random.normal(k_feat, (N, in_dim), jnp.float32)
    params = make_params(k_par, in_dim, hidden_dim, n_classes, n_layers)

    out = gin_net_forward(A, P, h, params)
    out = jax.block_until_ready(out)

    ref = ref_forward(A, P, h, params)
    assert out.shape == (G, n_classes)
    np.testing.assert_allclose(np.asarray(out), np.asarray(ref),
                               rtol=1e-4, atol=1e-4)
    print("KERNEL_OK")
</pallas_src>

<mosaic_0001>
module attributes {stable_mosaic.version = 11 : i64} {
  func.func @fused_kernel(%arg0: i32, %arg1: memref<24x24xf32, #tpu.memory_space<vmem>>, %arg2: memref<8x24xf32, #tpu.memory_space<vmem>>, %arg3: memref<24x16xf32, #tpu.memory_space<vmem>>, %arg4: memref<16x128xf32, #tpu.memory_space<vmem>>, %arg5: memref<1x128xf32, #tpu.memory_space<vmem>>, %arg6: memref<2x128x128xf32, #tpu.memory_space<vmem>>, %arg7: memref<2x1x128xf32, #tpu.memory_space<vmem>>, %arg8: memref<2x128x128xf32, #tpu.memory_space<vmem>>, %arg9: memref<2x1x128xf32, #tpu.memory_space<vmem>>, %arg10: memref<2x1x128xf32, #tpu.memory_space<vmem>>, %arg11: memref<2x1x128xf32, #tpu.memory_space<vmem>>, %arg12: memref<3x128x128xf32, #tpu.memory_space<vmem>>, %arg13: memref<3x1x128xf32, #tpu.memory_space<vmem>>, %arg14: memref<8x128xf32, #tpu.memory_space<vmem>>) attributes {dimension_semantics = [#tpu.dimension_semantics<arbitrary>], iteration_bounds = array<i64: 1>, scalar_prefetch = 0 : i64, scratch_operands = 0 : i64, tpu.core_type = #tpu.core_type<tc>, window_params = [{pipeline_mode = #tpu.pipeline_mode<synchronous>, transform_indices = @transform_0, window_bounds = array<i64: 24, 24>}, {pipeline_mode = #tpu.pipeline_mode<synchronous>, transform_indices = @transform_1, window_bounds = array<i64: 8, 24>}, {pipeline_mode = #tpu.pipeline_mode<synchronous>, transform_indices = @transform_2, window_bounds = array<i64: 24, 16>}, {pipeline_mode = #tpu.pipeline_mode<synchronous>, transform_indices = @transform_3, window_bounds = array<i64: 16, 128>}, {pipeline_mode = #tpu.pipeline_mode<synchronous>, transform_indices = @transform_4, window_bounds = array<i64: 1, 128>}, {pipeline_mode = #tpu.pipeline_mode<synchronous>, transform_indices = @transform_5, window_bounds = array<i64: 2, 128, 128>}, {pipeline_mode = #tpu.pipeline_mode<synchronous>, transform_indices = @transform_6, window_bounds = array<i64: 2, 1, 128>}, {pipeline_mode = #tpu.pipeline_mode<synchronous>, transform_indices = @transform_7, window_bounds = array<i64: 2, 128, 128>}, {pipeline_mode = #tpu.pipeline_mode<synchronous>, transform_indices = @transform_8, window_bounds = array<i64: 2, 1, 128>}, {pipeline_mode = #tpu.pipeline_mode<synchronous>, transform_indices = @transform_9, window_bounds = array<i64: 2, 1, 128>}, {pipeline_mode = #tpu.pipeline_mode<synchronous>, transform_indices = @transform_10, window_bounds = array<i64: 2, 1, 128>}, {pipeline_mode = #tpu.pipeline_mode<synchronous>, transform_indices = @transform_11, window_bounds = array<i64: 3, 128, 128>}, {pipeline_mode = #tpu.pipeline_mode<synchronous>, transform_indices = @transform_12, window_bounds = array<i64: 3, 1, 128>}, {pipeline_mode = #tpu.pipeline_mode<synchronous>, transform_indices = @transform_13, window_bounds = array<i64: 8, 128>}]} {
    %c0 = arith.constant 0 : index
    %c0_0 = arith.constant 0 : index
    %0 = vector.load %arg1[%c0, %c0_0] : memref<24x24xf32, #tpu.memory_space<vmem>>, vector<24x24xf32>
    %c0_1 = arith.constant 0 : index
    %c0_2 = arith.constant 0 : index
    %1 = vector.load %arg2[%c0_1, %c0_2] : memref<8x24xf32, #tpu.memory_space<vmem>>, vector<8x24xf32>
    %c0_3 = arith.constant 0 : index
    %c0_4 = arith.constant 0 : index
    %2 = vector.load %arg3[%c0_3, %c0_4] : memref<24x16xf32, #tpu.memory_space<vmem>>, vector<24x16xf32>
    %c0_5 = arith.constant 0 : index
    %c0_6 = arith.constant 0 : index
    %3 = vector.load %arg4[%c0_5, %c0_6] : memref<16x128xf32, #tpu.memory_space<vmem>>, vector<16x128xf32>
    %cst = arith.constant dense<0.000000e+00> : vector<24x128xf32>
    %4 = tpu.matmul %2, %3, %cst {dimension_numbers = #tpu.dot_dimension_numbers<[1], [0], [0], [1], [0, 0, 1, 1], [], []>} : vector<24x16xf32>, vector<16x128xf32>, vector<24x128xf32> -> vector<24x128xf32>
    %c0_7 = arith.constant 0 : index
    %c0_8 = arith.constant 0 : index
    %5 = vector.load %arg5[%c0_7, %c0_8] : memref<1x128xf32, #tpu.memory_space<vmem>>, vector<1x128xf32>
    %6 = vector.broadcast %5 : vector<1x128xf32> to vector<24x128xf32>
    %7 = arith.addf %4, %6 : vector<24x128xf32>
    %cst_9 = arith.constant dense<0.000000e+00> : vector<8x128xf32>
    %8 = tpu.matmul %1, %7, %cst_9 {dimension_numbers = #tpu.dot_dimension_numbers<[1], [0], [0], [1], [0, 0, 1, 1], [], []>} : vector<8x24xf32>, vector<24x128xf32>, vector<8x128xf32> -> vector<8x128xf32>
    %c0_10 = arith.constant 0 : index
    %c0_11 = arith.constant 0 : index
    %c0_12 = arith.constant 0 : index
    %9 = vector.load %arg12[%c0_10, %c0_11, %c0_12] : memref<3x128x128xf32, #tpu.memory_space<vmem>>, vector<1x128x128xf32>
    %10 = vector.shape_cast %9 : vector<1x128x128xf32> to vector<128x128xf32>
    %cst_13 = arith.constant dense<0.000000e+00> : vector<8x128xf32>
    %11 = tpu.matmul %8, %10, %cst_13 {dimension_numbers = #tpu.dot_dimension_numbers<[1], [0], [0], [1], [0, 0, 1, 1], [], []>} : vector<8x128xf32>, vector<128x128xf32>, vector<8x128xf32> -> vector<8x128xf32>
    %c0_14 = arith.constant 0 : index
    %c0_15 = arith.constant 0 : index
    %c0_16 = arith.constant 0 : index
    %12 = vector.load %arg13[%c0_14, %c0_15, %c0_16] : memref<3x1x128xf32, #tpu.memory_space<vmem>>, vector<1x1x128xf32>
    %13 = vector.shape_cast %12 : vector<1x1x128xf32> to vector<1x128xf32>
    %14 = vector.broadcast %13 : vector<1x128xf32> to vector<8x128xf32>
    %15 = arith.addf %11, %14 : vector<8x128xf32>
    %cst_17 = arith.constant dense<0.000000e+00> : vector<24x128xf32>
    %16 = tpu.matmul %0, %7, %cst_17 {dimension_numbers = #tpu.dot_dimension_numbers<[1], [0], [0], [1], [0, 0, 1, 1], [], []>} : vector<24x24xf32>, vector<24x128xf32>, vector<24x128xf32> -> vector<24x128xf32>
    %17 = arith.addf %7, %16 : vector<24x128xf32>
    %c0_18 = arith.constant 0 : index
    %c0_19 = arith.constant 0 : index
    %c0_20 = arith.constant 0 : index
    %18 = vector.load %arg6[%c0_18, %c0_19, %c0_20] : memref<2x128x128xf32, #tpu.memory_space<vmem>>, vector<1x128x128xf32>
    %19 = vector.shape_cast %18 : vector<1x128x128xf32> to vector<128x128xf32>
    %cst_21 = arith.constant dense<0.000000e+00> : vector<24x128xf32>
    %20 = tpu.matmul %17, %19, %cst_21 {dimension_numbers = #tpu.dot_dimension_numbers<[1], [0], [0], [1], [0, 0, 1, 1], [], []>} : vector<24x128xf32>, vector<128x128xf32>, vector<24x128xf32> -> vector<24x128xf32>
    %c0_22 = arith.constant 0 : index
    %c0_23 = arith.constant 0 : index
    %c0_24 = arith.constant 0 : index
    %21 = vector.load %arg7[%c0_22, %c0_23, %c0_24] : memref<2x1x128xf32, #tpu.memory_space<vmem>>, vector<1x1x128xf32>
    %22 = vector.shape_cast %21 : vector<1x1x128xf32> to vector<1x128xf32>
    %23 = vector.broadcast %22 : vector<1x128xf32> to vector<24x128xf32>
    %24 = arith.addf %20, %23 : vector<24x128xf32>
    %cst_25 = arith.constant 0.000000e+00 : f32
    %25 = vector.broadcast %cst_25 : f32 to vector<24x128xf32>
    %26 = arith.maximumf %24, %25 : vector<24x128xf32>
    %c0_26 = arith.constant 0 : index
    %c0_27 = arith.constant 0 : index
    %c0_28 = arith.constant 0 : index
    %27 = vector.load %arg8[%c0_26, %c0_27, %c0_28] : memref<2x128x128xf32, #tpu.memory_space<vmem>>, vector<1x128x128xf32>
    %28 = vector.shape_cast %27 : vector<1x128x128xf32> to vector<128x128xf32>
    %cst_29 = arith.constant dense<0.000000e+00> : vector<24x128xf32>
    %29 = tpu.matmul %26, %28, %cst_29 {dimension_numbers = #tpu.dot_dimension_numbers<[1], [0], [0], [1], [0, 0, 1, 1], [], []>} : vector<24x128xf32>, vector<128x128xf32>, vector<24x128xf32> -> vector<24x128xf32>
    %c0_30 = arith.constant 0 : index
    %c0_31 = arith.constant 0 : index
    %c0_32 = arith.constant 0 : index
    %30 = vector.load %arg9[%c0_30, %c0_31, %c0_32] : memref<2x1x128xf32, #tpu.memory_space<vmem>>, vector<1x1x128xf32>
    %31 = vector.shape_cast %30 : vector<1x1x128xf32> to vector<1x128xf32>
    %32 = vector.broadcast %31 : vector<1x128xf32> to vector<24x128xf32>
    %33 = arith.addf %29, %32 : vector<24x128xf32>
    %cst_33 = arith.constant 0.000000e+00 : f32
    %34 = vector.broadcast %cst_33 : f32 to vector<24x128xf32>
    %35 = arith.maximumf %33, %34 : vector<24x128xf32>
    %c0_34 = arith.constant 0 : index
    %c0_35 = arith.constant 0 : index
    %c0_36 = arith.constant 0 : index
    %36 = vector.load %arg10[%c0_34, %c0_35, %c0_36] : memref<2x1x128xf32, #tpu.memory_space<vmem>>, vector<1x1x128xf32>
    %37 = vector.shape_cast %36 : vector<1x1x128xf32> to vector<1x128xf32>
    %38 = vector.broadcast %37 : vector<1x128xf32> to vector<24x128xf32>
    %39 = arith.mulf %35, %38 : vector<24x128xf32>
    %c0_37 = arith.constant 0 : index
    %c0_38 = arith.constant 0 : index
    %c0_39 = arith.constant 0 : index
    %40 = vector.load %arg11[%c0_37, %c0_38, %c0_39] : memref<2x1x128xf32, #tpu.memory_space<vmem>>, vector<1x1x128xf32>
    %41 = vector.shape_cast %40 : vector<1x1x128xf32> to vector<1x128xf32>
    %42 = vector.broadcast %41 : vector<1x128xf32> to vector<24x128xf32>
    %43 = arith.addf %39, %42 : vector<24x128xf32>
    %cst_40 = arith.constant 0.000000e+00 : f32
    %44 = vector.broadcast %cst_40 : f32 to vector<24x128xf32>
    %45 = arith.maximumf %43, %44 : vector<24x128xf32>
    %46 = arith.addf %7, %45 : vector<24x128xf32>
    %cst_41 = arith.constant dense<0.000000e+00> : vector<8x128xf32>
    %47 = tpu.matmul %1, %46, %cst_41 {dimension_numbers = #tpu.dot_dimension_numbers<[1], [0], [0], [1], [0, 0, 1, 1], [], []>} : vector<8x24xf32>, vector<24x128xf32>, vector<8x128xf32> -> vector<8x128xf32>
    %c1 = arith.constant 1 : index
    %c0_42 = arith.constant 0 : index
    %c0_43 = arith.constant 0 : index
    %48 = vector.load %arg12[%c1, %c0_42, %c0_43] : memref<3x128x128xf32, #tpu.memory_space<vmem>>, vector<1x128x128xf32>
    %49 = vector.shape_cast %48 : vector<1x128x128xf32> to vector<128x128xf32>
    %cst_44 = arith.constant dense<0.000000e+00> : vector<8x128xf32>
    %50 = tpu.matmul %47, %49, %cst_44 {dimension_numbers = #tpu.dot_dimension_numbers<[1], [0], [0], [1], [0, 0, 1, 1], [], []>} : vector<8x128xf32>, vector<128x128xf32>, vector<8x128xf32> -> vector<8x128xf32>
    %c1_45 = arith.constant 1 : index
    %c0_46 = arith.constant 0 : index
    %c0_47 = arith.constant 0 : index
    %51 = vector.load %arg13[%c1_45, %c0_46, %c0_47] : memref<3x1x128xf32, #tpu.memory_space<vmem>>, vector<1x1x128xf32>
    %52 = vector.shape_cast %51 : vector<1x1x128xf32> to vector<1x128xf32>
    %53 = vector.broadcast %52 : vector<1x128xf32> to vector<8x128xf32>
    %54 = arith.addf %50, %53 : vector<8x128xf32>
    %55 = arith.addf %15, %54 : vector<8x128xf32>
    %cst_48 = arith.constant dense<0.000000e+00> : vector<24x128xf32>
    %56 = tpu.matmul %0, %46, %cst_48 {dimension_numbers = #tpu.dot_dimension_numbers<[1], [0], [0], [1], [0, 0, 1, 1], [], []>} : vector<24x24xf32>, vector<24x128xf32>, vector<24x128xf32> -> vector<24x128xf32>
    %57 = arith.addf %46, %56 : vector<24x128xf32>
    %c1_49 = arith.constant 1 : index
    %c0_50 = arith.constant 0 : index
    %c0_51 = arith.constant 0 : index
    %58 = vector.load %arg6[%c1_49, %c0_50, %c0_51] : memref<2x128x128xf32, #tpu.memory_space<vmem>>, vector<1x128x128xf32>
    %59 = vector.shape_cast %58 : vector<1x128x128xf32> to vector<128x128xf32>
    %cst_52 = arith.constant dense<0.000000e+00> : vector<24x128xf32>
    %60 = tpu.matmul %57, %59, %cst_52 {dimension_numbers = #tpu.dot_dimension_numbers<[1], [0], [0], [1], [0, 0, 1, 1], [], []>} : vector<24x128xf32>, vector<128x128xf32>, vector<24x128xf32> -> vector<24x128xf32>
    %c1_53 = arith.constant 1 : index
    %c0_54 = arith.constant 0 : index
    %c0_55 = arith.constant 0 : index
    %61 = vector.load %arg7[%c1_53, %c0_54, %c0_55] : memref<2x1x128xf32, #tpu.memory_space<vmem>>, vector<1x1x128xf32>
    %62 = vector.shape_cast %61 : vector<1x1x128xf32> to vector<1x128xf32>
    %63 = vector.broadcast %62 : vector<1x128xf32> to vector<24x128xf32>
    %64 = arith.addf %60, %63 : vector<24x128xf32>
    %cst_56 = arith.constant 0.000000e+00 : f32
    %65 = vector.broadcast %cst_56 : f32 to vector<24x128xf32>
    %66 = arith.maximumf %64, %65 : vector<24x128xf32>
    %c1_57 = arith.constant 1 : index
    %c0_58 = arith.constant 0 : index
    %c0_59 = arith.constant 0 : index
    %67 = vector.load %arg8[%c1_57, %c0_58, %c0_59] : memref<2x128x128xf32, #tpu.memory_space<vmem>>, vector<1x128x128xf32>
    %68 = vector.shape_cast %67 : vector<1x128x128xf32> to vector<128x128xf32>
    %cst_60 = arith.constant dense<0.000000e+00> : vector<24x128xf32>
    %69 = tpu.matmul %66, %68, %cst_60 {dimension_numbers = #tpu.dot_dimension_numbers<[1], [0], [0], [1], [0, 0, 1, 1], [], []>} : vector<24x128xf32>, vector<128x128xf32>, vector<24x128xf32> -> vector<24x128xf32>
    %c1_61 = arith.constant 1 : index
    %c0_62 = arith.constant 0 : index
    %c0_63 = arith.constant 0 : index
    %70 = vector.load %arg9[%c1_61, %c0_62, %c0_63] : memref<2x1x128xf32, #tpu.memory_space<vmem>>, vector<1x1x128xf32>
    %71 = vector.shape_cast %70 : vector<1x1x128xf32> to vector<1x128xf32>
    %72 = vector.broadcast %71 : vector<1x128xf32> to vector<24x128xf32>
    %73 = arith.addf %69, %72 : vector<24x128xf32>
    %cst_64 = arith.constant 0.000000e+00 : f32
    %74 = vector.broadcast %cst_64 : f32 to vector<24x128xf32>
    %75 = arith.maximumf %73, %74 : vector<24x128xf32>
    %c1_65 = arith.constant 1 : index
    %c0_66 = arith.constant 0 : index
    %c0_67 = arith.constant 0 : index
    %76 = vector.load %arg10[%c1_65, %c0_66, %c0_67] : memref<2x1x128xf32, #tpu.memory_space<vmem>>, vector<1x1x128xf32>
    %77 = vector.shape_cast %76 : vector<1x1x128xf32> to vector<1x128xf32>
    %78 = vector.broadcast %77 : vector<1x128xf32> to vector<24x128xf32>
    %79 = arith.mulf %75, %78 : vector<24x128xf32>
    %c1_68 = arith.constant 1 : index
    %c0_69 = arith.constant 0 : index
    %c0_70 = arith.constant 0 : index
    %80 = vector.load %arg11[%c1_68, %c0_69, %c0_70] : memref<2x1x128xf32, #tpu.memory_space<vmem>>, vector<1x1x128xf32>
    %81 = vector.shape_cast %80 : vector<1x1x128xf32> to vector<1x128xf32>
    %82 = vector.broadcast %81 : vector<1x128xf32> to vector<24x128xf32>
    %83 = arith.addf %79, %82 : vector<24x128xf32>
    %cst_71 = arith.constant 0.000000e+00 : f32
    %84 = vector.broadcast %cst_71 : f32 to vector<24x128xf32>
    %85 = arith.maximumf %83, %84 : vector<24x128xf32>
    %86 = arith.addf %46, %85 : vector<24x128xf32>
    %cst_72 = arith.constant dense<0.000000e+00> : vector<8x128xf32>
    %87 = tpu.matmul %1, %86, %cst_72 {dimension_numbers = #tpu.dot_dimension_numbers<[1], [0], [0], [1], [0, 0, 1, 1], [], []>} : vector<8x24xf32>, vector<24x128xf32>, vector<8x128xf32> -> vector<8x128xf32>
    %c2 = arith.constant 2 : index
    %c0_73 = arith.constant 0 : index
    %c0_74 = arith.constant 0 : index
    %88 = vector.load %arg12[%c2, %c0_73, %c0_74] : memref<3x128x128xf32, #tpu.memory_space<vmem>>, vector<1x128x128xf32>
    %89 = vector.shape_cast %88 : vector<1x128x128xf32> to vector<128x128xf32>
    %cst_75 = arith.constant dense<0.000000e+00> : vector<8x128xf32>
    %90 = tpu.matmul %87, %89, %cst_75 {dimension_numbers = #tpu.dot_dimension_numbers<[1], [0], [0], [1], [0, 0, 1, 1], [], []>} : vector<8x128xf32>, vector<128x128xf32>, vector<8x128xf32> -> vector<8x128xf32>
    %c2_76 = arith.constant 2 : index
    %c0_77 = arith.constant 0 : index
    %c0_78 = arith.constant 0 : index
    %91 = vector.load %arg13[%c2_76, %c0_77, %c0_78] : memref<3x1x128xf32, #tpu.memory_space<vmem>>, vector<1x1x128xf32>
    %92 = vector.shape_cast %91 : vector<1x1x128xf32> to vector<1x128xf32>
    %93 = vector.broadcast %92 : vector<1x128xf32> to vector<8x128xf32>
    %94 = arith.addf %90, %93 : vector<8x128xf32>
    %95 = arith.addf %55, %94 : vector<8x128xf32>
    %c0_79 = arith.constant 0 : index
    %c0_80 = arith.constant 0 : index
    %96 = vector.load %arg14[%c0_79, %c0_80] : memref<8x128xf32, #tpu.memory_space<vmem>>, vector<8x128xf32>
    tpu.vector_store %arg14[%c0_79, %c0_80], %95 {strides = array<i32>} : memref<8x128xf32, #tpu.memory_space<vmem>>, vector<8x128xf32>,
    return
  }
  func.func @transform_0(%arg0: i32) -> (i32, i32) {
    %c0_i32 = arith.constant 0 : i32
    %c0_i32_0 = arith.constant 0 : i32
    %c0_i32_1 = arith.constant 0 : i32
    return %c0_i32, %c0_i32_0 : i32, i32
  }
  func.func @transform_1(%arg0: i32) -> (i32, i32) {
    %c0_i32 = arith.constant 0 : i32
    %c0_i32_0 = arith.constant 0 : i32
    %c0_i32_1 = arith.constant 0 : i32
    return %c0_i32, %c0_i32_0 : i32, i32
  }
  func.func @transform_2(%arg0: i32) -> (i32, i32) {
    %c0_i32 = arith.constant 0 : i32
    %c0_i32_0 = arith.constant 0 : i32
    %c0_i32_1 = arith.constant 0 : i32
    return %c0_i32, %c0_i32_0 : i32, i32
  }
  func.func @transform_3(%arg0: i32) -> (i32, i32) {
    %c0_i32 = arith.constant 0 : i32
    %c0_i32_0 = arith.constant 0 : i32
    %c0_i32_1 = arith.constant 0 : i32
    return %c0_i32, %c0_i32_0 : i32, i32
  }
  func.func @transform_4(%arg0: i32) -> (i32, i32) {
    %c0_i32 = arith.constant 0 : i32
    %c0_i32_0 = arith.constant 0 : i32
    %c0_i32_1 = arith.constant 0 : i32
    return %c0_i32, %c0_i32_0 : i32, i32
  }
  func.func @transform_5(%arg0: i32) -> (i32, i32, i32) {
    %c0_i32 = arith.constant 0 : i32
    %c0_i32_0 = arith.constant 0 : i32
    %c0_i32_1 = arith.constant 0 : i32
    %c0_i32_2 = arith.constant 0 : i32
    return %c0_i32, %c0_i32_0, %c0_i32_1 : i32, i32, i32
  }
  func.func @transform_6(%arg0: i32) -> (i32, i32, i32) {
    %c0_i32 = arith.constant 0 : i32
    %c0_i32_0 = arith.constant 0 : i32
    %c0_i32_1 = arith.constant 0 : i32
    %c0_i32_2 = arith.constant 0 : i32
    return %c0_i32, %c0_i32_0, %c0_i32_1 : i32, i32, i32
  }
  func.func @transform_7(%arg0: i32) -> (i32, i32, i32) {
    %c0_i32 = arith.constant 0 : i32
    %c0_i32_0 = arith.constant 0 : i32
    %c0_i32_1 = arith.constant 0 : i32
    %c0_i32_2 = arith.constant 0 : i32
    return %c0_i32, %c0_i32_0, %c0_i32_1 : i32, i32, i32
  }
  func.func @transform_8(%arg0: i32) -> (i32, i32, i32) {
    %c0_i32 = arith.constant 0 : i32
    %c0_i32_0 = arith.constant 0 : i32
    %c0_i32_1 = arith.constant 0 : i32
    %c0_i32_2 = arith.constant 0 : i32
    return %c0_i32, %c0_i32_0, %c0_i32_1 : i32, i32, i32
  }
  func.func @transform_9(%arg0: i32) -> (i32, i32, i32) {
    %c0_i32 = arith.constant 0 : i32
    %c0_i32_0 = arith.constant 0 : i32
    %c0_i32_1 = arith.constant 0 : i32
    %c0_i32_2 = arith.constant 0 : i32
    return %c0_i32, %c0_i32_0, %c0_i32_1 : i32, i32, i32
  }
  func.func @transform_10(%arg0: i32) -> (i32, i32, i32) {
    %c0_i32 = arith.constant 0 : i32
    %c0_i32_0 = arith.constant 0 : i32
    %c0_i32_1 = arith.constant 0 : i32
    %c0_i32_2 = arith.constant 0 : i32
    return %c0_i32, %c0_i32_0, %c0_i32_1 : i32, i32, i32
  }
  func.func @transform_11(%arg0: i32) -> (i32, i32, i32) {
    %c0_i32 = arith.constant 0 : i32
    %c0_i32_0 = arith.constant 0 : i32
    %c0_i32_1 = arith.constant 0 : i32
    %c0_i32_2 = arith.constant 0 : i32
    return %c0_i32, %c0_i32_0, %c0_i32_1 : i32, i32, i32
  }
  func.func @transform_12(%arg0: i32) -> (i32, i32, i32) {
    %c0_i32 = arith.constant 0 : i32
    %c0_i32_0 = arith.constant 0 : i32
    %c0_i32_1 = arith.constant 0 : i32
    %c0_i32_2 = arith.constant 0 : i32
    return %c0_i32, %c0_i32_0, %c0_i32_1 : i32, i32, i32
  }
  func.func @transform_13(%arg0: i32) -> (i32, i32) {
    %c0_i32 = arith.constant 0 : i32
    %c0_i32_0 = arith.constant 0 : i32
    %c0_i32_1 = arith.constant 0 : i32
    return %c0_i32, %c0_i32_0 : i32, i32
  }
}

</mosaic_0001>

<llo_original>
// kernel: tpu_custom_call.1
$region0: #{tpu_custom_call.1}
  #allocation0 [shape = 'u32[]', space=smem, size = 0x4, offset = 0x4, fixed_abs, tag = 'smem constant byte address 0x4 - core index']
  #allocation1 [shape = 'u32[144,128]{1,0:T(1,128)}', space=vmem, size = 0x12000, scoped, tag = 'internal scratch']
  %s0 = inlined_call_operand.vmem [shape: f32[24,24], index: 0, kind: input, shape index: {}]
  %s1 = inlined_call_operand.hbm [shape: f32[8,24], index: 1, kind: input, shape index: {}]
  %s2 = inlined_call_operand.vmem [shape: f32[24,16], index: 2, kind: input, shape index: {}]
  %s3 = inlined_call_operand.vmem [shape: f32[16,128], index: 3, kind: input, shape index: {}]
  %s4 = inlined_call_operand.vmem [shape: f32[1,128], index: 4, kind: input, shape index: {}]
  %s5 = inlined_call_operand.hbm [shape: f32[2,128,128], index: 5, kind: input, shape index: {}]
  %s6 = inlined_call_operand.vmem [shape: f32[2,1,128], index: 6, kind: input, shape index: {}]
  %s7 = inlined_call_operand.hbm [shape: f32[2,128,128], index: 7, kind: input, shape index: {}]
  %s8 = inlined_call_operand.vmem [shape: f32[2,1,128], index: 8, kind: input, shape index: {}]
  %s9 = inlined_call_operand.vmem [shape: f32[2,1,128], index: 9, kind: input, shape index: {}]
  %s10 = inlined_call_operand.vmem [shape: f32[2,1,128], index: 10, kind: input, shape index: {}]
  %s11 = inlined_call_operand.hbm [shape: f32[3,128,128], index: 11, kind: input, shape index: {}]
  %s12 = inlined_call_operand.vmem [shape: f32[3,1,128], index: 12, kind: input, shape index: {}]
  %s13 = inlined_call_operand.hbm [shape: f32[8,128], index: 13, kind: output, shape index: {}]
  %s14 = sld [smem:[#allocation0]]
  $region78: #{tpu_custom_call.1} parent=0
    _
  %s16 = ssub.s32 1, %s14
  %s17 = scalar_select 0, %s16, %s14
  $region1: #{tpu_custom_call.1} parent=0
    #allocation2 [shape = 'u8[4096]{0}', space=vmem, size = 0x1000, scoped, tag = 'input window, operand 1, single buffered']
    #allocation3 [shape = 's32[1]{0}', space=sflag, size = 0x4, scoped, tag = 'scoped memory for tpu_custom_call.1']
    #allocation4 [shape = 's32[1]{0}', space=sflag, size = 0x4, scoped, tag = 'scoped memory for tpu_custom_call.1']
    #allocation5 [shape = 'u8[131072]{0}', space=vmem, size = 0x20000, scoped, tag = 'input window, operand 5, single buffered']
    #allocation6 [shape = 's32[1]{0}', space=sflag, size = 0x4, scoped, tag = 'scoped memory for tpu_custom_call.1']
    #allocation7 [shape = 'u8[131072]{0}', space=vmem, size = 0x20000, scoped, tag = 'input window, operand 7, single buffered']
    #allocation8 [shape = 'u8[196608]{0}', space=vmem, size = 0x30000, scoped, tag = 'input window, operand 11, single buffered']
    #allocation9 [shape = 's32[1]{0}', space=sflag, size = 0x4, scoped, tag = 'scoped memory for tpu_custom_call.1']
    #allocation10 [shape = 'u8[4096]{0}', space=vmem, size = 0x1000, scoped, tag = 'output window, operand 0, single buffered']
    %18 = vsyncpa [#allocation3], 0
    %19 = vsyncpa [#allocation6], 0
    %20 = vsyncpa [#allocation9], 0
    %21 = vsyncpa [#allocation4], 0
    // Predicated region
    $region2: #{tpu_custom_call.1} parent=1 // pred_check
      _
    $region3: #{tpu_custom_call.1} parent=1 // pred_check_branch
      %23 = sbr.rel (0) target = $region5
    $region4: #{tpu_custom_call.1} parent=1 // pred_region
      _
    $region5: #{tpu_custom_call.1} parent=1 // pred_fallthru
      _
    // Predicated region
    $region6: #{tpu_custom_call.1} parent=1 // pred_check
      _
    $region7: #{tpu_custom_call.1} parent=1 // pred_check_branch
      %25 = sbr.rel (0) target = $region9
    $region8: #{tpu_custom_call.1} parent=1 // pred_region
      %s27 = ssub.s32 128, 128
      %28 = vsyncadd [#allocation3], %s27
      %s30 = sshll.u32 [#allocation2], 4
      %s31 = int_to_ptr.vmem [resolvable:$true] %s30
      %33 = dma.hbm_to_vmem [thread:$0]  %s1, 128, %s31, [#allocation3]
    $region9: #{tpu_custom_call.1} parent=1 // pred_fallthru
      _
    // Predicated region
    $region10: #{tpu_custom_call.1} parent=1 // pred_check
      _
    $region11: #{tpu_custom_call.1} parent=1 // pred_check_branch
      %35 = sbr.rel (0) target = $region13
    $region12: #{tpu_custom_call.1} parent=1 // pred_region
      _
    $region13: #{tpu_custom_call.1} parent=1 // pred_fallthru
      _
    // Predicated region
    $region14: #{tpu_custom_call.1} parent=1 // pred_check
      _
    $region15: #{tpu_custom_call.1} parent=1 // pred_check_branch
      %37 = sbr.rel (0) target = $region17
    $region16: #{tpu_custom_call.1} parent=1 // pred_region
      _
    $region17: #{tpu_custom_call.1} parent=1 // pred_fallthru
      _
    // Predicated region
    $region18: #{tpu_custom_call.1} parent=1 // pred_check
      _
    $region19: #{tpu_custom_call.1} parent=1 // pred_check_branch
      %39 = sbr.rel (0) target = $region21
    $region20: #{tpu_custom_call.1} parent=1 // pred_region
      _
    $region21: #{tpu_custom_call.1} parent=1 // pred_fallthru
      _
    // Predicated region
    $region22: #{tpu_custom_call.1} parent=1 // pred_check
      _
    $region23: #{tpu_custom_call.1} parent=1 // pred_check_branch
      %41 = sbr.rel (0) target = $region25
    $region24: #{tpu_custom_call.1} parent=1 // pred_region
      %s43 = ssub.s32 4096, 4096
      %44 = vsyncadd [#allocation6], %s43
      %s45 = sshll.u32 [#allocation5], 4
      %s46 = int_to_ptr.vmem [resolvable:$true] %s45
      %51 = dma.hbm_to_vmem [thread:$0]  %s5, 4096, %s46, [#allocation6], 128, 128, 8
    $region25: #{tpu_custom_call.1} parent=1 // pred_fallthru
      _
    // Predicated region
    $region26: #{tpu_custom_call.1} parent=1 // pred_check
      _
    $region27: #{tpu_custom_call.1} parent=1 // pred_check_branch
      %53 = sbr.rel (0) target = $region29
    $region28: #{tpu_custom_call.1} parent=1 // pred_region
      _
    $region29: #{tpu_custom_call.1} parent=1 // pred_fallthru
      _
    // Predicated region
    $region30: #{tpu_custom_call.1} parent=1 // pred_check
      _
    $region31: #{tpu_custom_call.1} parent=1 // pred_check_branch
      %55 = sbr.rel (0) target = $region33
    $region32: #{tpu_custom_call.1} parent=1 // pred_region
      %s57 = ssub.s32 4096, 4096
      %58 = vsyncadd [#allocation6], %s57
      %s59 = sshll.u32 [#allocation7], 4
      %s60 = int_to_ptr.vmem [resolvable:$true] %s59
      %65 = dma.hbm_to_vmem [thread:$0]  %s7, 4096, %s60, [#allocation6], 128, 128, 8
    $region33: #{tpu_custom_call.1} parent=1 // pred_fallthru
      _
    // Predicated region
    $region34: #{tpu_custom_call.1} parent=1 // pred_check
      _
    $region35: #{tpu_custom_call.1} parent=1 // pred_check_branch
      %67 = sbr.rel (0) target = $region37
    $region36: #{tpu_custom_call.1} parent=1 // pred_region
      _
    $region37: #{tpu_custom_call.1} parent=1 // pred_fallthru
      _
    // Predicated region
    $region38: #{tpu_custom_call.1} parent=1 // pred_check
      _
    $region39: #{tpu_custom_call.1} parent=1 // pred_check_branch
      %69 = sbr.rel (0) target = $region41
    $region40: #{tpu_custom_call.1} parent=1 // pred_region
      _
    $region41: #{tpu_custom_call.1} parent=1 // pred_fallthru
      _
    // Predicated region
    $region42: #{tpu_custom_call.1} parent=1 // pred_check
      _
    $region43: #{tpu_custom_call.1} parent=1 // pred_check_branch
      %71 = sbr.rel (0) target = $region45
    $region44: #{tpu_custom_call.1} parent=1 // pred_region
      _
    $region45: #{tpu_custom_call.1} parent=1 // pred_fallthru
      _
    // Predicated region
    $region46: #{tpu_custom_call.1} parent=1 // pred_check
      _
    $region47: #{tpu_custom_call.1} parent=1 // pred_check_branch
      %73 = sbr.rel (0) target = $region49
    $region48: #{tpu_custom_call.1} parent=1 // pred_region
      %s75 = ssub.s32 6144, 6144
      %76 = vsyncadd [#allocation9], %s75
      %s77 = sshll.u32 [#allocation8], 4
      %s78 = int_to_ptr.vmem [resolvable:$true] %s77
      %83 = dma.hbm_to_vmem [thread:$0]  %s11, 6144, %s78, [#allocation9], 128, 128, 8
    $region49: #{tpu_custom_call.1} parent=1 // pred_fallthru
      _
    // Predicated region
    $region50: #{tpu_custom_call.1} parent=1 // pred_check
      _
    $region51: #{tpu_custom_call.1} parent=1 // pred_check_branch
      %85 = sbr.rel (0) target = $region53
    $region52: #{tpu_custom_call.1} parent=1 // pred_region
      _
    $region53: #{tpu_custom_call.1} parent=1 // pred_fallthru
      _
    // Predicated region
    $region54: #{tpu_custom_call.1} parent=1 // pred_check
      _
    $region55: #{tpu_custom_call.1} parent=1 // pred_check_branch
      %87 = sbr.rel (0) target = $region57
    $region56: #{tpu_custom_call.1} parent=1 // pred_region
      %88 = dma.done [#allocation3], 128
    $region57: #{tpu_custom_call.1} parent=1 // pred_fallthru
      _
    // Predicated region
    $region58: #{tpu_custom_call.1} parent=1 // pred_check
      _
    $region59: #{tpu_custom_call.1} parent=1 // pred_check_branch
      %90 = sbr.rel (0) target = $region61
    $region60: #{tpu_custom_call.1} parent=1 // pred_region
      %91 = dma.done [#allocation6], 4096
    $region61: #{tpu_custom_call.1} parent=1 // pred_fallthru
      _
    // Predicated region
    $region62: #{tpu_custom_call.1} parent=1 // pred_check
      _
    $region63: #{tpu_custom_call.1} parent=1 // pred_check_branch
      %93 = sbr.rel (0) target = $region65
    $region64: #{tpu_custom_call.1} parent=1 // pred_region
      %94 = dma.done [#allocation6], 4096
    $region65: #{tpu_custom_call.1} parent=1 // pred_fallthru
      _
    // Predicated region
    $region66: #{tpu_custom_call.1} parent=1 // pred_check
      _
    $region67: #{tpu_custom_call.1} parent=1 // pred_check_branch
      %96 = sbr.rel (0) target = $region69
    $region68: #{tpu_custom_call.1} parent=1 // pred_region
      %97 = dma.done [#allocation9], 6144
    $region69: #{tpu_custom_call.1} parent=1 // pred_fallthru
      _
    %v98 = vld [vmem:[%s0] sm:$0xff]
    %v99 = vld [vmem:[%s0 + $0x8] sm:$0xff]
    %v100 = vld [vmem:[%s0 + $0x10] sm:$0xff]
    %v101 = vld [vmem:[#allocation2] sm:$0xff]
    %v102 = vld [vmem:[%s2] sm:$0xff]
    %v103 = vld [vmem:[%s2 + $0x8] sm:$0xff]
    %v104 = vld [vmem:[%s2 + $0x10] sm:$0xff]
    %v105 = vld [vmem:[%s3] sm:$0xff]
    %v106 = vld [vmem:[%s3 + $0x8] sm:$0xff]
    %v107 = vld [vmem:[%s4] sm:$0x1]
    %v109 = vlaneseq
    %v110 = vshrl.u32 %v109, 7
    %v111 = vsub.s32 0, %v110
    %v112 = vrot.slane %v107, %v111
    %vm114 = vcmask 130048
    %v116 = vsel %vm114, %v102, 0
    %v119 = vsel %vm114, %v103, 0
    %v122 = vsel %vm114, %v104, 0
    %124 = vmatprep.subr.mxu0 0.0
    %125 = vmatpush1.msra.mxu0 %v105
    %126 = vmatprep.subr.mxu0 0.0
    %127 = vmatpush1.msra.mxu0 %v106
    %128 = vmatprep.subr.mxu0 0.0
    %129 = vmatpush1.msra.mxu0 0.0
    %130 = vmatprep.subr.mxu0 0.0
    %131 = vmatpush1.msra.mxu0 0.0
    %132 = vmatprep.subr.mxu0 0.0
    %133 = vmatpush1.msra.mxu0 0.0
    %134 = vmatprep.subr.mxu0 0.0
    %135 = vmatpush1.msra.mxu0 0.0
    %136 = vmatprep.subr.mxu0 0.0
    %137 = vmatpush1.msra.mxu0 0.0
    %138 = vmatprep.subr.mxu0 0.0
    %139 = vmatpush1.msra.mxu0 0.0
    %140 = vmatprep.subr.mxu0 0.0
    %141 = vmatpush1.msra.mxu0 0.0
    %142 = vmatprep.subr.mxu0 0.0
    %143 = vmatpush1.msra.mxu0 0.0
    %144 = vmatprep.subr.mxu0 0.0
    %145 = vmatpush1.msra.mxu0 0.0
    %146 = vmatprep.subr.mxu0 0.0
    %147 = vmatpush1.msra.mxu0 0.0
    %148 = vmatprep.subr.mxu0 0.0
    %149 = vmatpush1.msra.mxu0 0.0
    %150 = vmatprep.subr.mxu0 0.0
    %151 = vmatpush1.msra.mxu0 0.0
    %152 = vmatprep.subr.mxu0 0.0
    %153 = vmatpush1.msra.mxu0 0.0
    %154 = vmatprep.subr.mxu0 0.0
    %155 = vmatpush1.msra.mxu0 0.0
    %156 = vmatprep.subr.mxu0 0.0
    %157 = vmatpush1.msra.mxu0 0.0
    %158 = vmatprep.subr.mxu0 0.0
    %159 = vmatpush1.msra.mxu0 0.0
    %160 = vmatprep.subr.mxu0 0.0
    %161 = vmatpush1.msra.mxu0 0.0
    %162 = vmatprep.subr.mxu0 0.0
    %163 = vmatpush1.msra.mxu0 0.0
    %164 = vmatprep.subr.mxu0 0.0
    %165 = vmatpush1.msra.mxu0 0.0
    %166 = vmatprep.subr.mxu0 0.0
    %167 = vmatpush1.msra.mxu0 0.0
    %168 = vmatprep.subr.mxu0 0.0
    %169 = vmatpush1.msra.mxu0 0.0
    %170 = vmatprep.subr.mxu0 0.0
    %171 = vmatpush1.msra.mxu0 0.0
    %172 = vmatprep.subr.mxu0 0.0
    %173 = vmatpush1.msra.mxu0 0.0
    %174 = vmatprep.subr.mxu0 0.0
    %175 = vmatpush1.msra.mxu0 0.0
    %176 = vmatprep.subr.mxu0 0.0
    %177 = vmatpush1.msra.mxu0 0.0
    %178 = vmatprep.subr.mxu0 0.0
    %179 = vmatpush1.msra.mxu0 0.0
    %180 = vmatprep.subr.mxu0 0.0
    %181 = vmatpush1.msra.mxu0 0.0
    %182 = vmatprep.subr.mxu0 0.0
    %183 = vmatpush1.msra.mxu0 0.0
    %184 = vmatprep.subr.mxu0 0.0
    %185 = vmatpush1.msra.mxu0 0.0
    %186 = vmatprep.subr.mxu0 0.0
    %187 = vmatpush1.msra.mxu0 0.0
    %188 = vmatprep.mubr.f32.mxu0 0.0
    %189 = vmatmul.mubr.f32.gmra.mrb[0].mxu0 %v116
    %v190 = vpop.f32.mrb[0].mxu0
    %v191 = vadd.f32 %v112, %v190
    %v192 = vpop.f32.mrb[0].mxu0
    %193 = vmatprep.mubr.f32.mxu0 0.0
    %194 = vmatmul.mubr.f32.gmra.mrb[0].mxu0 %v119
    %v195 = vpop.f32.mrb[0].mxu0
    %v196 = vadd.f32 %v112, %v195
    %v197 = vpop.f32.mrb[0].mxu0
    %198 = vmatprep.mubr.f32.mxu0 0.0
    %199 = vmatmul.mubr.f32.gmra.mrb[0].mxu0 %v122
    %v200 = vpop.f32.mrb[0].mxu0
    %v201 = vadd.f32 %v112, %v200
    %v202 = vpop.f32.mrb[0].mxu0
    %203 = vdwg.mxu0
    %vm204 = vcmask 195584
    %v206 = vsel %vm204, %v101, 0
    %208 = vmatprep.subr.mxu0 0.0
    %209 = vmatpush1.msra.mxu0 %v191
    %210 = vmatprep.subr.mxu0 0.0
    %211 = vmatpush1.msra.mxu0 %v196
    %212 = vmatprep.subr.mxu0 0.0
    %213 = vmatpush1.msra.mxu0 %v201
    %214 = vmatprep.subr.mxu0 0.0
    %215 = vmatpush1.msra.mxu0 0.0
    %216 = vmatprep.subr.mxu0 0.0
    %217 = vmatpush1.msra.mxu0 0.0
    %218 = vmatprep.subr.mxu0 0.0
    %219 = vmatpush1.msra.mxu0 0.0
    %220 = vmatprep.subr.mxu0 0.0
    %221 = vmatpush1.msra.mxu0 0.0
    %222 = vmatprep.subr.mxu0 0.0
    %223 = vmatpush1.msra.mxu0 0.0
    %224 = vmatprep.subr.mxu0 0.0
    %225 = vmatpush1.msra.mxu0 0.0
    %226 = vmatprep.subr.mxu0 0.0
    %227 = vmatpush1.msra.mxu0 0.0
    %228 = vmatprep.subr.mxu0 0.0
    %229 = vmatpush1.msra.mxu0 0.0
    %230 = vmatprep.subr.mxu0 0.0
    %231 = vmatpush1.msra.mxu0 0.0
    %232 = vmatprep.subr.mxu0 0.0
    %233 = vmatpush1.msra.mxu0 0.0
    %234 = vmatprep.subr.mxu0 0.0
    %235 = vmatpush1.msra.mxu0 0.0
    %236 = vmatprep.subr.mxu0 0.0
    %237 = vmatpush1.msra.mxu0 0.0
    %238 = vmatprep.subr.mxu0 0.0
    %239 = vmatpush1.msra.mxu0 0.0
    %240 = vmatprep.subr.mxu0 0.0
    %241 = vmatpush1.msra.mxu0 0.0
    %242 = vmatprep.subr.mxu0 0.0
    %243 = vmatpush1.msra.mxu0 0.0
    %244 = vmatprep.subr.mxu0 0.0
    %245 = vmatpush1.msra.mxu0 0.0
    %246 = vmatprep.subr.mxu0 0.0
    %247 = vmatpush1.msra.mxu0 0.0
    %248 = vmatprep.subr.mxu0 0.0
    %249 = vmatpush1.msra.mxu0 0.0
    %250 = vmatprep.subr.mxu0 0.0
    %251 = vmatpush1.msra.mxu0 0.0
    %252 = vmatprep.subr.mxu0 0.0
    %253 = vmatpush1.msra.mxu0 0.0
    %254 = vmatprep.subr.mxu0 0.0
    %255 = vmatpush1.msra.mxu0 0.0
    %256 = vmatprep.subr.mxu0 0.0
    %257 = vmatpush1.msra.mxu0 0.0
    %258 = vmatprep.subr.mxu0 0.0
    %259 = vmatpush1.msra.mxu0 0.0
    %260 = vmatprep.subr.mxu0 0.0
    %261 = vmatpush1.msra.mxu0 0.0
    %262 = vmatprep.subr.mxu0 0.0
    %263 = vmatpush1.msra.mxu0 0.0
    %264 = vmatprep.subr.mxu0 0.0
    %265 = vmatpush1.msra.mxu0 0.0
    %266 = vmatprep.subr.mxu0 0.0
    %267 = vmatpush1.msra.mxu0 0.0
    %268 = vmatprep.subr.mxu0 0.0
    %269 = vmatpush1.msra.mxu0 0.0
    %270 = vmatprep.subr.mxu0 0.0
    %271 = vmatpush1.msra.mxu0 0.0
    %272 = vmatprep.mubr.f32.mxu0 0.0
    %273 = vmatmul.mubr.f32.gmra.mrb[0].mxu0 %v206
    %v274 = vpop.f32.mrb[0].mxu0
    %v275 = vadd.f32 0.0, %v274
    %v276 = vpop.f32.mrb[0].mxu0
    %277 = vdwg.mxu0
    %v278 = vld [vmem:[#allocation8] sm:$0xff]
    %v279 = vld [vmem:[#allocation8 + $0x8] sm:$0xff]
    %v280 = vld [vmem:[#allocation8 + $0x10] sm:$0xff]
    %v281 = vld [vmem:[#allocation8 + $0x18] sm:$0xff]
    %v282 = vld [vmem:[#allocation8 + $0x20] sm:$0xff]
    %v283 = vld [vmem:[#allocation8 + $0x28] sm:$0xff]
    %v284 = vld [vmem:[#allocation8 + $0x30] sm:$0xff]
    %v285 = vld [vmem:[#allocation8 + $0x38] sm:$0xff]
    %v286 = vld [vmem:[#allocation8 + $0x40] sm:$0xff]
    %v287 = vld [vmem:[#allocation8 + $0x48] sm:$0xff]
    %v288 = vld [vmem:[#allocation8 + $0x50] sm:$0xff]
    %v289 = vld [vmem:[#allocation8 + $0x58] sm:$0xff]
    %v290 = vld [vmem:[#allocation8 + $0x60] sm:$0xff]
    %v291 = vld [vmem:[#allocation8 + $0x68] sm:$0xff]
    %v292 = vld [vmem:[#allocation8 + $0x70] sm:$0xff]
    %v293 = vld [vmem:[#allocation8 + $0x78] sm:$0xff]
    %v294 = vld [vmem:[%s12] sm:$0x1]
    %v296 = vlaneseq
    %v297 = vshrl.u32 %v296, 7
    %v298 = vsub.s32 0, %v297
    %v299 = vrot.slane %v294, %v298
    %301 = vmatprep.subr.mxu0 0.0
    %302 = vmatpush1.msra.mxu0 %v278
    %303 = vmatprep.subr.mxu0 0.0
    %304 = vmatpush1.msra.mxu0 %v279
    %305 = vmatprep.subr.mxu0 0.0
    %306 = vmatpush1.msra.mxu0 %v280
    %307 = vmatprep.subr.mxu0 0.0
    %308 = vmatpush1.msra.mxu0 %v281
    %309 = vmatprep.subr.mxu0 0.0
    %310 = vmatpush1.msra.mxu0 %v282
    %311 = vmatprep.subr.mxu0 0.0
    %312 = vmatpush1.msra.mxu0 %v283
    %313 = vmatprep.subr.mxu0 0.0
    %314 = vmatpush1.msra.mxu0 %v284
    %315 = vmatprep.subr.mxu0 0.0
    %316 = vmatpush1.msra.mxu0 %v285
    %317 = vmatprep.subr.mxu0 0.0
    %318 = vmatpush1.msra.mxu0 %v286
    %319 = vmatprep.subr.mxu0 0.0
    %320 = vmatpush1.msra.mxu0 %v287
    %321 = vmatprep.subr.mxu0 0.0
    %322 = vmatpush1.msra.mxu0 %v288
    %323 = vmatprep.subr.mxu0 0.0
    %324 = vmatpush1.msra.mxu0 %v289
    %325 = vmatprep.subr.mxu0 0.0
    %326 = vmatpush1.msra.mxu0 %v290
    %327 = vmatprep.subr.mxu0 0.0
    %328 = vmatpush1.msra.mxu0 %v291
    %329 = vmatprep.subr.mxu0 0.0
    %330 = vmatpush1.msra.mxu0 %v292
    %331 = vmatprep.subr.mxu0 0.0
    %332 = vmatpush1.msra.mxu0 %v293
    %333 = vmatprep.subr.mxu0 0.0
    %334 = vmatpush1.msra.mxu0 0.0
    %335 = vmatprep.subr.mxu0 0.0
    %336 = vmatpush1.msra.mxu0 0.0
    %337 = vmatprep.subr.mxu0 0.0
    %338 = vmatpush1.msra.mxu0 0.0
    %339 = vmatprep.subr.mxu0 0.0
    %340 = vmatpush1.msra.mxu0 0.0
    %341 = vmatprep.subr.mxu0 0.0
    %342 = vmatpush1.msra.mxu0 0.0
    %343 = vmatprep.subr.mxu0 0.0
    %344 = vmatpush1.msra.mxu0 0.0
    %345 = vmatprep.subr.mxu0 0.0
    %346 = vmatpush1.msra.mxu0 0.0
    %347 = vmatprep.subr.mxu0 0.0
    %348 = vmatpush1.msra.mxu0 0.0
    %349 = vmatprep.subr.mxu0 0.0
    %350 = vmatpush1.msra.mxu0 0.0
    %351 = vmatprep.subr.mxu0 0.0
    %352 = vmatpush1.msra.mxu0 0.0
    %353 = vmatprep.subr.mxu0 0.0
    %354 = vmatpush1.msra.mxu0 0.0
    %355 = vmatprep.subr.mxu0 0.0
    %356 = vmatpush1.msra.mxu0 0.0
    %357 = vmatprep.subr.mxu0 0.0
    %358 = vmatpush1.msra.mxu0 0.0
    %359 = vmatprep.subr.mxu0 0.0
    %360 = vmatpush1.msra.mxu0 0.0
    %361 = vmatprep.subr.mxu0 0.0
    %362 = vmatpush1.msra.mxu0 0.0
    %363 = vmatprep.subr.mxu0 0.0
    %364 = vmatpush1.msra.mxu0 0.0
    %365 = vmatprep.mubr.f32.mxu0 0.0
    %366 = vmatmul.mubr.f32.gmra.mrb[0].mxu0 %v275
    %v367 = vpop.f32.mrb[0].mxu0
    %v368 = vadd.f32 %v299, %v367
    %v369 = vpop.f32.mrb[0].mxu0
    %370 = vdwg.mxu0
    %v372 = vsel %vm204, %v98, 0
    %v375 = vsel %vm204, %v99, 0
    %v378 = vsel %vm204, %v100, 0
    %380 = vmatprep.subr.mxu0 0.0
    %381 = vmatpush1.msra.mxu0 %v191
    %382 = vmatprep.subr.mxu0 0.0
    %383 = vmatpush1.msra.mxu0 %v196
    %384 = vmatprep.subr.mxu0 0.0
    %385 = vmatpush1.msra.mxu0 %v201
    %386 = vmatprep.subr.mxu0 0.0
    %387 = vmatpush1.msra.mxu0 0.0
    %388 = vmatprep.subr.mxu0 0.0
    %389 = vmatpush1.msra.mxu0 0.0
    %390 = vmatprep.subr.mxu0 0.0
    %391 = vmatpush1.msra.mxu0 0.0
    %392 = vmatprep.subr.mxu0 0.0
    %393 = vmatpush1.msra.mxu0 0.0
    %394 = vmatprep.subr.mxu0 0.0
    %395 = vmatpush1.msra.mxu0 0.0
    %396 = vmatprep.subr.mxu0 0.0
    %397 = vmatpush1.msra.mxu0 0.0
    %398 = vmatprep.subr.mxu0 0.0
    %399 = vmatpush1.msra.mxu0 0.0
    %400 = vmatprep.subr.mxu0 0.0
    %401 = vmatpush1.msra.mxu0 0.0
    %402 = vmatprep.subr.mxu0 0.0
    %403 = vmatpush1.msra.mxu0 0.0
    %404 = vmatprep.subr.mxu0 0.0
    %405 = vmatpush1.msra.mxu0 0.0
    %406 = vmatprep.subr.mxu0 0.0
    %407 = vmatpush1.msra.mxu0 0.0
    %408 = vmatprep.subr.mxu0 0.0
    %409 = vmatpush1.msra.mxu0 0.0
    %410 = vmatprep.subr.mxu0 0.0
    %411 = vmatpush1.msra.mxu0 0.0
    %412 = vmatprep.subr.mxu0 0.0
    %413 = vmatpush1.msra.mxu0 0.0
    %414 = vmatprep.subr.mxu0 0.0
    %415 = vmatpush1.msra.mxu0 0.0
    %416 = vmatprep.subr.mxu0 0.0
    %417 = vmatpush1.msra.mxu0 0.0
    %418 = vmatprep.subr.mxu0 0.0
    %419 = vmatpush1.msra.mxu0 0.0
    %420 = vmatprep.subr.mxu0 0.0
    %421 = vmatpush1.msra.mxu0 0.0
    %422 = vmatprep.subr.mxu0 0.0
    %423 = vmatpush1.msra.mxu0 0.0
    %424 = vmatprep.subr.mxu0 0.0
    %425 = vmatpush1.msra.mxu0 0.0
    %426 = vmatprep.subr.mxu0 0.0
    %427 = vmatpush1.msra.mxu0 0.0
    %428 = vmatprep.subr.mxu0 0.0
    %429 = vmatpush1.msra.mxu0 0.0
    %430 = vmatprep.subr.mxu0 0.0
    %431 = vmatpush1.msra.mxu0 0.0
    %432 = vmatprep.subr.mxu0 0.0
    %433 = vmatpush1.msra.mxu0 0.0
    %434 = vmatprep.subr.mxu0 0.0
    %435 = vmatpush1.msra.mxu0 0.0
    %436 = vmatprep.subr.mxu0 0.0
    %437 = vmatpush1.msra.mxu0 0.0
    %438 = vmatprep.subr.mxu0 0.0
    %439 = vmatpush1.msra.mxu0 0.0
    %440 = vmatprep.subr.mxu0 0.0
    %441 = vmatpush1.msra.mxu0 0.0
    %442 = vmatprep.subr.mxu0 0.0
    %443 = vmatpush1.msra.mxu0 0.0
    %444 = vmatprep.mubr.f32.mxu0 0.0
    %445 = vmatmul.mubr.f32.gmra.mrb[0].mxu0 %v372
    %v446 = vpop.f32.mrb[0].mxu0
    %v447 = vadd.f32 0.0, %v446
    %v448 = vpop.f32.mrb[0].mxu0
    %449 = vmatprep.mubr.f32.mxu0 0.0
    %450 = vmatmul.mubr.f32.gmra.mrb[0].mxu0 %v375
    %v451 = vpop.f32.mrb[0].mxu0
    %v452 = vadd.f32 0.0, %v451
    %v453 = vpop.f32.mrb[0].mxu0
    %454 = vmatprep.mubr.f32.mxu0 0.0
    %455 = vmatmul.mubr.f32.gmra.mrb[0].mxu0 %v378
    %v456 = vpop.f32.mrb[0].mxu0
    %v457 = vadd.f32 0.0, %v456
    %v458 = vpop.f32.mrb[0].mxu0
    %459 = vdwg.mxu0
    %v460 = vadd.f32 %v191, %v447
    %v461 = vadd.f32 %v196, %v452
    %v462 = vadd.f32 %v201, %v457
    %v463 = vld [vmem:[#allocation5] sm:$0xff]
    %v464 = vld [vmem:[#allocation5 + $0x8] sm:$0xff]
    %v465 = vld [vmem:[#allocation5 + $0x10] sm:$0xff]
    %v466 = vld [vmem:[#allocation5 + $0x18] sm:$0xff]
    %v467 = vld [vmem:[#allocation5 + $0x20] sm:$0xff]
    %v468 = vld [vmem:[#allocation5 + $0x28] sm:$0xff]
    %v469 = vld [vmem:[#allocation5 + $0x30] sm:$0xff]
    %v470 = vld [vmem:[#allocation5 + $0x38] sm:$0xff]
    %v471 = vld [vmem:[#allocation5 + $0x40] sm:$0xff]
    %v472 = vld [vmem:[#allocation5 + $0x48] sm:$0xff]
    %v473 = vld [vmem:[#allocation5 + $0x50] sm:$0xff]
    %v474 = vld [vmem:[#allocation5 + $0x58] sm:$0xff]
    %v475 = vld [vmem:[#allocation5 + $0x60] sm:$0xff]
    %v476 = vld [vmem:[#allocation5 + $0x68] sm:$0xff]
    %v477 = vld [vmem:[#allocation5 + $0x70] sm:$0xff]
    %v478 = vld [vmem:[#allocation5 + $0x78] sm:$0xff]
    %v479 = vld [vmem:[%s6] sm:$0x1]
    %v481 = vlaneseq
    %v482 = vshrl.u32 %v481, 7
    %v483 = vsub.s32 0, %v482
    %v484 = vrot.slane %v479, %v483
    %486 = vmatprep.subr.mxu0 0.0
    %487 = vmatpush1.msra.mxu0 %v463
    %488 = vmatprep.subr.mxu0 0.0
    %489 = vmatpush1.msra.mxu0 %v464
    %490 = vmatprep.subr.mxu0 0.0
    %491 = vmatpush1.msra.mxu0 %v465
    %492 = vmatprep.subr.mxu0 0.0
    %493 = vmatpush1.msra.mxu0 %v466
    %494 = vmatprep.subr.mxu0 0.0
    %495 = vmatpush1.msra.mxu0 %v467
    %496 = vmatprep.subr.mxu0 0.0
    %497 = vmatpush1.msra.mxu0 %v468
    %498 = vmatprep.subr.mxu0 0.0
    %499 = vmatpush1.msra.mxu0 %v469
    %500 = vmatprep.subr.mxu0 0.0
    %501 = vmatpush1.msra.mxu0 %v470
    %502 = vmatprep.subr.mxu0 0.0
    %503 = vmatpush1.msra.mxu0 %v471
    %504 = vmatprep.subr.mxu0 0.0
    %505 = vmatpush1.msra.mxu0 %v472
    %506 = vmatprep.subr.mxu0 0.0
    %507 = vmatpush1.msra.mxu0 %v473
    %508 = vmatprep.subr.mxu0 0.0
    %509 = vmatpush1.msra.mxu0 %v474
    %510 = vmatprep.subr.mxu0 0.0
    %511 = vmatpush1.msra.mxu0 %v475
    %512 = vmatprep.subr.mxu0 0.0
    %513 = vmatpush1.msra.mxu0 %v476
    %514 = vmatprep.subr.mxu0 0.0
    %515 = vmatpush1.msra.mxu0 %v477
    %516 = vmatprep.subr.mxu0 0.0
    %517 = vmatpush1.msra.mxu0 %v478
    %518 = vmatprep.subr.mxu0 0.0
    %519 = vmatpush1.msra.mxu0 0.0
    %520 = vmatprep.subr.mxu0 0.0
    %521 = vmatpush1.msra.mxu0 0.0
    %522 = vmatprep.subr.mxu0 0.0
    %523 = vmatpush1.msra.mxu0 0.0
    %524 = vmatprep.subr.mxu0 0.0
    %525 = vmatpush1.msra.mxu0 0.0
    %526 = vmatprep.subr.mxu0 0.0
    %527 = vmatpush1.msra.mxu0 0.0
    %528 = vmatprep.subr.mxu0 0.0
    %529 = vmatpush1.msra.mxu0 0.0
    %530 = vmatprep.subr.mxu0 0.0
    %531 = vmatpush1.msra.mxu0 0.0
    %532 = vmatprep.subr.mxu0 0.0
    %533 = vmatpush1.msra.mxu0 0.0
    %534 = vmatprep.subr.mxu0 0.0
    %535 = vmatpush1.msra.mxu0 0.0
    %536 = vmatprep.subr.mxu0 0.0
    %537 = vmatpush1.msra.mxu0 0.0
    %538 = vmatprep.subr.mxu0 0.0
    %539 = vmatpush1.msra.mxu0 0.0
    %540 = vmatprep.subr.mxu0 0.0
    %541 = vmatpush1.msra.mxu0 0.0
    %542 = vmatprep.subr.mxu0 0.0
    %543 = vmatpush1.msra.mxu0 0.0
    %544 = vmatprep.subr.mxu0 0.0
    %545 = vmatpush1.msra.mxu0 0.0
    %546 = vmatprep.subr.mxu0 0.0
    %547 = vmatpush1.msra.mxu0 0.0
    %548 = vmatprep.subr.mxu0 0.0
    %549 = vmatpush1.msra.mxu0 0.0
    %550 = vmatprep.mubr.f32.mxu0 0.0
    %551 = vmatmul.mubr.f32.gmra.mrb[0].mxu0 %v460
    %v552 = vpop.f32.mrb[0].mxu0
    %v553 = vadd.f32 %v484, %v552
    %v554 = vpop.f32.mrb[0].mxu0
    %555 = vmatprep.mubr.f32.mxu0 0.0
    %556 = vmatmul.mubr.f32.gmra.mrb[0].mxu0 %v461
    %v557 = vpop.f32.mrb[0].mxu0
    %v558 = vadd.f32 %v484, %v557
    %v559 = vpop.f32.mrb[0].mxu0
    %560 = vmatprep.mubr.f32.mxu0 0.0
    %561 = vmatmul.mubr.f32.gmra.mrb[0].mxu0 %v462
    %v562 = vpop.f32.mrb[0].mxu0
    %v563 = vadd.f32 %v484, %v562
    %v564 = vpop.f32.mrb[0].mxu0
    %565 = vdwg.mxu0
    %v566 = vmax.f32 %v553, 0.0
    %v567 = vmax.f32 %v558, 0.0
    %v568 = vmax.f32 %v563, 0.0
    %v569 = vld [vmem:[#allocation7] sm:$0xff]
    %v570 = vld [vmem:[#allocation7 + $0x8] sm:$0xff]
    %v571 = vld [vmem:[#allocation7 + $0x10] sm:$0xff]
    %v572 = vld [vmem:[#allocation7 + $0x18] sm:$0xff]
    %v573 = vld [vmem:[#allocation7 + $0x20] sm:$0xff]
    %v574 = vld [vmem:[#allocation7 + $0x28] sm:$0xff]
    %v575 = vld [vmem:[#allocation7 + $0x30] sm:$0xff]
    %v576 = vld [vmem:[#allocation7 + $0x38] sm:$0xff]
    %v577 = vld [vmem:[#allocation7 + $0x40] sm:$0xff]
    %v578 = vld [vmem:[#allocation7 + $0x48] sm:$0xff]
    %v579 = vld [vmem:[#allocation7 + $0x50] sm:$0xff]
    %v580 = vld [vmem:[#allocation7 + $0x58] sm:$0xff]
    %v581 = vld [vmem:[#allocation7 + $0x60] sm:$0xff]
    %v582 = vld [vmem:[#allocation7 + $0x68] sm:$0xff]
    %v583 = vld [vmem:[#allocation7 + $0x70] sm:$0xff]
    %v584 = vld [vmem:[#allocation7 + $0x78] sm:$0xff]
    %v585 = vld [vmem:[%s8] sm:$0x1]
    %v587 = vlaneseq
    %v588 = vshrl.u32 %v587, 7
    %v589 = vsub.s32 0, %v588
    %v590 = vrot.slane %v585, %v589
    %592 = vmatprep.subr.mxu0 0.0
    %593 = vmatpush1.msra.mxu0 %v569
    %594 = vmatprep.subr.mxu0 0.0
    %595 = vmatpush1.msra.mxu0 %v570
    %596 = vmatprep.subr.mxu0 0.0
    %597 = vmatpush1.msra.mxu0 %v571
    %598 = vmatprep.subr.mxu0 0.0
    %599 = vmatpush1.msra.mxu0 %v572
    %600 = vmatprep.subr.mxu0 0.0
    %601 = vmatpush1.msra.mxu0 %v573
    %602 = vmatprep.subr.mxu0 0.0
    %603 = vmatpush1.msra.mxu0 %v574
    %604 = vmatprep.subr.mxu0 0.0
    %605 = vmatpush1.msra.mxu0 %v575
    %606 = vmatprep.subr.mxu0 0.0
    %607 = vmatpush1.msra.mxu0 %v576
    %608 = vmatprep.subr.mxu0 0.0
    %609 = vmatpush1.msra.mxu0 %v577
    %610 = vmatprep.subr.mxu0 0.0
    %611 = vmatpush1.msra.mxu0 %v578
    %612 = vmatprep.subr.mxu0 0.0
    %613 = vmatpush1.msra.mxu0 %v579
    %614 = vmatprep.subr.mxu0 0.0
    %615 = vmatpush1.msra.mxu0 %v580
    %616 = vmatprep.subr.mxu0 0.0
    %617 = vmatpush1.msra.mxu0 %v581
    %618 = vmatprep.subr.mxu0 0.0
    %619 = vmatpush1.msra.mxu0 %v582
    %620 = vmatprep.subr.mxu0 0.0
    %621 = vmatpush1.msra.mxu0 %v583
    %622 = vmatprep.subr.mxu0 0.0
    %623 = vmatpush1.msra.mxu0 %v584
    %624 = vmatprep.subr.mxu0 0.0
    %625 = vmatpush1.msra.mxu0 0.0
    %626 = vmatprep.subr.mxu0 0.0
    %627 = vmatpush1.msra.mxu0 0.0
    %628 = vmatprep.subr.mxu0 0.0
    %629 = vmatpush1.msra.mxu0 0.0
    %630 = vmatprep.subr.mxu0 0.0
    %631 = vmatpush1.msra.mxu0 0.0
    %632 = vmatprep.subr.mxu0 0.0
    %633 = vmatpush1.msra.mxu0 0.0
    %634 = vmatprep.subr.mxu0 0.0
    %635 = vmatpush1.msra.mxu0 0.0
    %636 = vmatprep.subr.mxu0 0.0
    %637 = vmatpush1.msra.mxu0 0.0
    %638 = vmatprep.subr.mxu0 0.0
    %639 = vmatpush1.msra.mxu0 0.0
    %640 = vmatprep.subr.mxu0 0.0
    %641 = vmatpush1.msra.mxu0 0.0
    %642 = vmatprep.subr.mxu0 0.0
    %643 = vmatpush1.msra.mxu0 0.0
    %644 = vmatprep.subr.mxu0 0.0
    %645 = vmatpush1.msra.mxu0 0.0
    %646 = vmatprep.subr.mxu0 0.0
    %647 = vmatpush1.msra.mxu0 0.0
    %648 = vmatprep.subr.mxu0 0.0
    %649 = vmatpush1.msra.mxu0 0.0
    %650 = vmatprep.subr.mxu0 0.0
    %651 = vmatpush1.msra.mxu0 0.0
    %652 = vmatprep.subr.mxu0 0.0
    %653 = vmatpush1.msra.mxu0 0.0
    %654 = vmatprep.subr.mxu0 0.0
    %655 = vmatpush1.msra.mxu0 0.0
    %656 = vmatprep.mubr.f32.mxu0 0.0
    %657 = vmatmul.mubr.f32.gmra.mrb[0].mxu0 %v566
    %v658 = vpop.f32.mrb[0].mxu0
    %v659 = vadd.f32 %v590, %v658
    %v660 = vpop.f32.mrb[0].mxu0
    %661 = vmatprep.mubr.f32.mxu0 0.0
    %662 = vmatmul.mubr.f32.gmra.mrb[0].mxu0 %v567
    %v663 = vpop.f32.mrb[0].mxu0
    %v664 = vadd.f32 %v590, %v663
    %v665 = vpop.f32.mrb[0].mxu0
    %666 = vmatprep.mubr.f32.mxu0 0.0
    %667 = vmatmul.mubr.f32.gmra.mrb[0].mxu0 %v568
    %v668 = vpop.f32.mrb[0].mxu0
    %v669 = vadd.f32 %v590, %v668
    %v670 = vpop.f32.mrb[0].mxu0
    %671 = vdwg.mxu0
    %v672 = vmax.f32 %v659, 0.0
    %v673 = vmax.f32 %v664, 0.0
    %v674 = vmax.f32 %v669, 0.0
    %v675 = vld [vmem:[%s9] sm:$0x1]
    %v677 = vlaneseq
    %v678 = vshrl.u32 %v677, 7
    %v679 = vsub.s32 0, %v678
    %v680 = vrot.slane %v675, %v679
    %v682 = vmul.f32 %v672, %v680
    %v683 = vmul.f32 %v673, %v680
    %v684 = vmul.f32 %v674, %v680
    %v685 = vld [vmem:[%s10] sm:$0x1]
    %v687 = vlaneseq
    %v688 = vshrl.u32 %v687, 7
    %v689 = vsub.s32 0, %v688
    %v690 = vrot.slane %v685, %v689
    %v692 = vadd.f32 %v682, %v690
    %v693 = vadd.f32 %v683, %v690
    %v694 = vadd.f32 %v684, %v690
    %v695 = vmax.f32 %v692, 0.0
    %v696 = vmax.f32 %v693, 0.0
    %v697 = vmax.f32 %v694, 0.0
    %v698 = vadd.f32 %v191, %v695
    %v699 = vadd.f32 %v196, %v696
    %v700 = vadd.f32 %v201, %v697
    %701 = vmatprep.subr.mxu0 0.0
    %702 = vmatpush1.msra.mxu0 %v698
    %703 = vmatprep.subr.mxu0 0.0
    %704 = vmatpush1.msra.mxu0 %v699
    %705 = vmatprep.subr.mxu0 0.0
    %706 = vmatpush1.msra.mxu0 %v700
    %707 = vmatprep.subr.mxu0 0.0
    %708 = vmatpush1.msra.mxu0 0.0
    %709 = vmatprep.subr.mxu0 0.0
    %710 = vmatpush1.msra.mxu0 0.0
    %711 = vmatprep.subr.mxu0 0.0
    %712 = vmatpush1.msra.mxu0 0.0
    %713 = vmatprep.subr.mxu0 0.0
    %714 = vmatpush1.msra.mxu0 0.0
    %715 = vmatprep.subr.mxu0 0.0
    %716 = vmatpush1.msra.mxu0 0.0
    %717 = vmatprep.subr.mxu0 0.0
    %718 = vmatpush1.msra.mxu0 0.0
    %719 = vmatprep.subr.mxu0 0.0
    %720 = vmatpush1.msra.mxu0 0.0
    %721 = vmatprep.subr.mxu0 0.0
    %722 = vmatpush1.msra.mxu0 0.0
    %723 = vmatprep.subr.mxu0 0.0
    %724 = vmatpush1.msra.mxu0 0.0
    %725 = vmatprep.subr.mxu0 0.0
    %726 = vmatpush1.msra.mxu0 0.0
    %727 = vmatprep.subr.mxu0 0.0
    %728 = vmatpush1.msra.mxu0 0.0
    %729 = vmatprep.subr.mxu0 0.0
    %730 = vmatpush1.msra.mxu0 0.0
    %731 = vmatprep.subr.mxu0 0.0
    %732 = vmatpush1.msra.mxu0 0.0
    %733 = vmatprep.subr.mxu0 0.0
    %734 = vmatpush1.msra.mxu0 0.0
    %735 = vmatprep.subr.mxu0 0.0
    %736 = vmatpush1.msra.mxu0 0.0
    %737 = vmatprep.subr.mxu0 0.0
    %738 = vmatpush1.msra.mxu0 0.0
    %739 = vmatprep.subr.mxu0 0.0
    %740 = vmatpush1.msra.mxu0 0.0
    %741 = vmatprep.subr.mxu0 0.0
    %742 = vmatpush1.msra.mxu0 0.0
    %743 = vmatprep.subr.mxu0 0.0
    %744 = vmatpush1.msra.mxu0 0.0
    %745 = vmatprep.subr.mxu0 0.0
    %746 = vmatpush1.msra.mxu0 0.0
    %747 = vmatprep.subr.mxu0 0.0
    %748 = vmatpush1.msra.mxu0 0.0
    %749 = vmatprep.subr.mxu0 0.0
    %750 = vmatpush1.msra.mxu0 0.0
    %751 = vmatprep.subr.mxu0 0.0
    %752 = vmatpush1.msra.mxu0 0.0
    %753 = vmatprep.subr.mxu0 0.0
    %754 = vmatpush1.msra.mxu0 0.0
    %755 = vmatprep.subr.mxu0 0.0
    %756 = vmatpush1.msra.mxu0 0.0
    %757 = vmatprep.subr.mxu0 0.0
    %758 = vmatpush1.msra.mxu0 0.0
    %759 = vmatprep.subr.mxu0 0.0
    %760 = vmatpush1.msra.mxu0 0.0
    %761 = vmatprep.subr.mxu0 0.0
    %762 = vmatpush1.msra.mxu0 0.0
    %763 = vmatprep.subr.mxu0 0.0
    %764 = vmatpush1.msra.mxu0 0.0
    %765 = vmatprep.mubr.f32.mxu0 0.0
    %766 = vmatmul.mubr.f32.gmra.mrb[0].mxu0 %v206
    %v767 = vpop.f32.mrb[0].mxu0
    %v768 = vadd.f32 0.0, %v767
    %v769 = vpop.f32.mrb[0].mxu0
    %770 = vdwg.mxu0
    %s771 = scalar_lea.vmem [#allocation8], 128
    %v772 = vld [vmem:[%s771] sm:$0xff]
    %v773 = vld [vmem:[%s771 + $0x8] sm:$0xff]
    %v774 = vld [vmem:[%s771 + $0x10] sm:$0xff]
    %v775 = vld [vmem:[%s771 + $0x18] sm:$0xff]
    %v776 = vld [vmem:[%s771 + $0x20] sm:$0xff]
    %v777 = vld [vmem:[%s771 + $0x28] sm:$0xff]
    %v778 = vld [vmem:[%s771 + $0x30] sm:$0xff]
    %v779 = vld [vmem:[%s771 + $0x38] sm:$0xff]
    %v780 = vld [vmem:[%s771 + $0x40] sm:$0xff]
    %v781 = vld [vmem:[%s771 + $0x48] sm:$0xff]
    %v782 = vld [vmem:[%s771 + $0x50] sm:$0xff]
    %v783 = vld [vmem:[%s771 + $0x58] sm:$0xff]
    %v784 = vld [vmem:[%s771 + $0x60] sm:$0xff]
    %v785 = vld [vmem:[%s771 + $0x68] sm:$0xff]
    %v786 = vld [vmem:[%s771 + $0x70] sm:$0xff]
    %v787 = vld [vmem:[%s771 + $0x78] sm:$0xff]
    %s788 = scalar_lea.vmem %s12, 1
    %v789 = vld [vmem:[%s788] sm:$0x1]
    %v791 = vlaneseq
    %v792 = vshrl.u32 %v791, 7
    %v793 = vsub.s32 0, %v792
    %v794 = vrot.slane %v789, %v793
    %796 = vmatprep.subr.mxu0 0.0
    %797 = vmatpush1.msra.mxu0 %v772
    %798 = vmatprep.subr.mxu0 0.0
    %799 = vmatpush1.msra.mxu0 %v773
    %800 = vmatprep.subr.mxu0 0.0
    %801 = vmatpush1.msra.mxu0 %v774
    %802 = vmatprep.subr.mxu0 0.0
    %803 = vmatpush1.msra.mxu0 %v775
    %804 = vmatprep.subr.mxu0 0.0
    %805 = vmatpush1.msra.mxu0 %v776
    %806 = vmatprep.subr.mxu0 0.0
    %807 = vmatpush1.msra.mxu0 %v777
    %808 = vmatprep.subr.mxu0 0.0
    %809 = vmatpush1.msra.mxu0 %v778
    %810 = vmatprep.subr.mxu0 0.0
    %811 = vmatpush1.msra.mxu0 %v779
    %812 = vmatprep.subr.mxu0 0.0
    %813 = vmatpush1.msra.mxu0 %v780
    %814 = vmatprep.subr.mxu0 0.0
    %815 = vmatpush1.msra.mxu0 %v781
    %816 = vmatprep.subr.mxu0 0.0
    %817 = vmatpush1.msra.mxu0 %v782
    %818 = vmatprep.subr.mxu0 0.0
    %819 = vmatpush1.msra.mxu0 %v783
    %820 = vmatprep.subr.mxu0 0.0
    %821 = vmatpush1.msra.mxu0 %v784
    %822 = vmatprep.subr.mxu0 0.0
    %823 = vmatpush1.msra.mxu0 %v785
    %824 = vmatprep.subr.mxu0 0.0
    %825 = vmatpush1.msra.mxu0 %v786
    %826 = vmatprep.subr.mxu0 0.0
    %827 = vmatpush1.msra.mxu0 %v787
    %828 = vmatprep.subr.mxu0 0.0
    %829 = vmatpush1.msra.mxu0 0.0
    %830 = vmatprep.subr.mxu0 0.0
    %831 = vmatpush1.msra.mxu0 0.0
    %832 = vmatprep.subr.mxu0 0.0
    %833 = vmatpush1.msra.mxu0 0.0
    %834 = vmatprep.subr.mxu0 0.0
    %835 = vmatpush1.msra.mxu0 0.0
    %836 = vmatprep.subr.mxu0 0.0
    %837 = vmatpush1.msra.mxu0 0.0
    %838 = vmatprep.subr.mxu0 0.0
    %839 = vmatpush1.msra.mxu0 0.0
    %840 = vmatprep.subr.mxu0 0.0
    %841 = vmatpush1.msra.mxu0 0.0
    %842 = vmatprep.subr.mxu0 0.0
    %843 = vmatpush1.msra.mxu0 0.0
    %844 = vmatprep.subr.mxu0 0.0
    %845 = vmatpush1.msra.mxu0 0.0
    %846 = vmatprep.subr.mxu0 0.0
    %847 = vmatpush1.msra.mxu0 0.0
    %848 = vmatprep.subr.mxu0 0.0
    %849 = vmatpush1.msra.mxu0 0.0
    %850 = vmatprep.subr.mxu0 0.0
    %851 = vmatpush1.msra.mxu0 0.0
    %852 = vmatprep.subr.mxu0 0.0
    %853 = vmatpush1.msra.mxu0 0.0
    %854 = vmatprep.subr.mxu0 0.0
    %855 = vmatpush1.msra.mxu0 0.0
    %856 = vmatprep.subr.mxu0 0.0
    %857 = vmatpush1.msra.mxu0 0.0
    %858 = vmatprep.subr.mxu0 0.0
    %859 = vmatpush1.msra.mxu0 0.0
    %860 = vmatprep.mubr.f32.mxu0 0.0
    %861 = vmatmul.mubr.f32.gmra.mrb[0].mxu0 %v768
    %v862 = vpop.f32.mrb[0].mxu0
    %v863 = vadd.f32 %v794, %v862
    %v864 = vpop.f32.mrb[0].mxu0
    %865 = vdwg.mxu0
    %v866 = vadd.f32 %v368, %v863
    %867 = vmatprep.subr.mxu0 0.0
    %868 = vmatpush1.msra.mxu0 %v698
    %869 = vmatprep.subr.mxu0 0.0
    %870 = vmatpush1.msra.mxu0 %v699
    %871 = vmatprep.subr.mxu0 0.0
    %872 = vmatpush1.msra.mxu0 %v700
    %873 = vmatprep.subr.mxu0 0.0
    %874 = vmatpush1.msra.mxu0 0.0
    %875 = vmatprep.subr.mxu0 0.0
    %876 = vmatpush1.msra.mxu0 0.0
    %877 = vmatprep.subr.mxu0 0.0
    %878 = vmatpush1.msra.mxu0 0.0
    %879 = vmatprep.subr.mxu0 0.0
    %880 = vmatpush1.msra.mxu0 0.0
    %881 = vmatprep.subr.mxu0 0.0
    %882 = vmatpush1.msra.mxu0 0.0
    %883 = vmatprep.subr.mxu0 0.0
    %884 = vmatpush1.msra.mxu0 0.0
    %885 = vmatprep.subr.mxu0 0.0
    %886 = vmatpush1.msra.mxu0 0.0
    %887 = vmatprep.subr.mxu0 0.0
    %888 = vmatpush1.msra.mxu0 0.0
    %889 = vmatprep.subr.mxu0 0.0
    %890 = vmatpush1.msra.mxu0 0.0
    %891 = vmatprep.subr.mxu0 0.0
    %892 = vmatpush1.msra.mxu0 0.0
    %893 = vmatprep.subr.mxu0 0.0
    %894 = vmatpush1.msra.mxu0 0.0
    %895 = vmatprep.subr.mxu0 0.0
    %896 = vmatpush1.msra.mxu0 0.0
    %897 = vmatprep.subr.mxu0 0.0
    %898 = vmatpush1.msra.mxu0 0.0
    %899 = vmatprep.subr.mxu0 0.0
    %900 = vmatpush1.msra.mxu0 0.0
    %901 = vmatprep.subr.mxu0 0.0
    %902 = vmatpush1.msra.mxu0 0.0
    %903 = vmatprep.subr.mxu0 0.0
    %904 = vmatpush1.msra.mxu0 0.0
    %905 = vmatprep.subr.mxu0 0.0
    %906 = vmatpush1.msra.mxu0 0.0
    %907 = vmatprep.subr.mxu0 0.0
    %908 = vmatpush1.msra.mxu0 0.0
    %909 = vmatprep.subr.mxu0 0.0
    %910 = vmatpush1.msra.mxu0 0.0
    %911 = vmatprep.subr.mxu0 0.0
    %912 = vmatpush1.msra.mxu0 0.0
    %913 = vmatprep.subr.mxu0 0.0
    %914 = vmatpush1.msra.mxu0 0.0
    %915 = vmatprep.subr.mxu0 0.0
    %916 = vmatpush1.msra.mxu0 0.0
    %917 = vmatprep.subr.mxu0 0.0
    %918 = vmatpush1.msra.mxu0 0.0
    %919 = vmatprep.subr.mxu0 0.0
    %920 = vmatpush1.msra.mxu0 0.0
    %921 = vmatprep.subr.mxu0 0.0
    %922 = vmatpush1.msra.mxu0 0.0
    %923 = vmatprep.subr.mxu0 0.0
    %924 = vmatpush1.msra.mxu0 0.0
    %925 = vmatprep.subr.mxu0 0.0
    %926 = vmatpush1.msra.mxu0 0.0
    %927 = vmatprep.subr.mxu0 0.0
    %928 = vmatpush1.msra.mxu0 0.0
    %929 = vmatprep.subr.mxu0 0.0
    %930 = vmatpush1.msra.mxu0 0.0
    %931 = vmatprep.mubr.f32.mxu0 0.0
    %932 = vmatmul.mubr.f32.gmra.mrb[0].mxu0 %v372
    %v933 = vpop.f32.mrb[0].mxu0
    %v934 = vadd.f32 0.0, %v933
    %v935 = vpop.f32.mrb[0].mxu0
    %936 = vmatprep.mubr.f32.mxu0 0.0
    %937 = vmatmul.mubr.f32.gmra.mrb[0].mxu0 %v375
    %v938 = vpop.f32.mrb[0].mxu0
    %v939 = vadd.f32 0.0, %v938
    %v940 = vpop.f32.mrb[0].mxu0
    %941 = vmatprep.mubr.f32.mxu0 0.0
    %942 = vmatmul.mubr.f32.gmra.mrb[0].mxu0 %v378
    %v943 = vpop.f32.mrb[0].mxu0
    %v944 = vadd.f32 0.0, %v943
    %v945 = vpop.f32.mrb[0].mxu0
    %946 = vdwg.mxu0
    %v947 = vadd.f32 %v698, %v934
    %v948 = vadd.f32 %v699, %v939
    %v949 = vadd.f32 %v700, %v944
    %s950 = scalar_lea.vmem [#allocation5], 128
    %v951 = vld [vmem:[%s950] sm:$0xff]
    %v952 = vld [vmem:[%s950 + $0x8] sm:$0xff]
    %v953 = vld [vmem:[%s950 + $0x10] sm:$0xff]
    %v954 = vld [vmem:[%s950 + $0x18] sm:$0xff]
    %v955 = vld [vmem:[%s950 + $0x20] sm:$0xff]
    %v956 = vld [vmem:[%s950 + $0x28] sm:$0xff]
    %v957 = vld [vmem:[%s950 + $0x30] sm:$0xff]
    %v958 = vld [vmem:[%s950 + $0x38] sm:$0xff]
    %v959 = vld [vmem:[%s950 + $0x40] sm:$0xff]
    %v960 = vld [vmem:[%s950 + $0x48] sm:$0xff]
    %v961 = vld [vmem:[%s950 + $0x50] sm:$0xff]
    %v962 = vld [vmem:[%s950 + $0x58] sm:$0xff]
    %v963 = vld [vmem:[%s950 + $0x60] sm:$0xff]
    %v964 = vld [vmem:[%s950 + $0x68] sm:$0xff]
    %v965 = vld [vmem:[%s950 + $0x70] sm:$0xff]
    %v966 = vld [vmem:[%s950 + $0x78] sm:$0xff]
    %s967 = scalar_lea.vmem %s6, 1
    %v968 = vld [vmem:[%s967] sm:$0x1]
    %v970 = vlaneseq
    %v971 = vshrl.u32 %v970, 7
    %v972 = vsub.s32 0, %v971
    %v973 = vrot.slane %v968, %v972
    %975 = vmatprep.subr.mxu0 0.0
    %976 = vmatpush1.msra.mxu0 %v951
    %977 = vmatprep.subr.mxu0 0.0
    %978 = vmatpush1.msra.mxu0 %v952
    %979 = vmatprep.subr.mxu0 0.0
    %980 = vmatpush1.msra.mxu0 %v953
    %981 = vmatprep.subr.mxu0 0.0
    %982 = vmatpush1.msra.mxu0 %v954
    %983 = vmatprep.subr.mxu0 0.0
    %984 = vmatpush1.msra.mxu0 %v955
    %985 = vmatprep.subr.mxu0 0.0
    %986 = vmatpush1.msra.mxu0 %v956
    %987 = vmatprep.subr.mxu0 0.0
    %988 = vmatpush1.msra.mxu0 %v957
    %989 = vmatprep.subr.mxu0 0.0
    %990 = vmatpush1.msra.mxu0 %v958
    %991 = vmatprep.subr.mxu0 0.0
    %992 = vmatpush1.msra.mxu0 %v959
    %993 = vmatprep.subr.mxu0 0.0
    %994 = vmatpush1.msra.mxu0 %v960
    %995 = vmatprep.subr.mxu0 0.0
    %996 = vmatpush1.msra.mxu0 %v961
    %997 = vmatprep.subr.mxu0 0.0
    %998 = vmatpush1.msra.mxu0 %v962
    %999 = vmatprep.subr.mxu0 0.0
    %1000 = vmatpush1.msra.mxu0 %v963
    %1001 = vmatprep.subr.mxu0 0.0
    %1002 = vmatpush1.msra.mxu0 %v964
    %1003 = vmatprep.subr.mxu0 0.0
    %1004 = vmatpush1.msra.mxu0 %v965
    %1005 = vmatprep.subr.mxu0 0.0
    %1006 = vmatpush1.msra.mxu0 %v966
    %1007 = vmatprep.subr.mxu0 0.0
    %1008 = vmatpush1.msra.mxu0 0.0
    %1009 = vmatprep.subr.mxu0 0.0
    %1010 = vmatpush1.msra.mxu0 0.0
    %1011 = vmatprep.subr.mxu0 0.0
    %1012 = vmatpush1.msra.mxu0 0.0
    %1013 = vmatprep.subr.mxu0 0.0
    %1014 = vmatpush1.msra.mxu0 0.0
    %1015 = vmatprep.subr.mxu0 0.0
    %1016 = vmatpush1.msra.mxu0 0.0
    %1017 = vmatprep.subr.mxu0 0.0
    %1018 = vmatpush1.msra.mxu0 0.0
    %1019 = vmatprep.subr.mxu0 0.0
    %1020 = vmatpush1.msra.mxu0 0.0
    %1021 = vmatprep.subr.mxu0 0.0
    %1022 = vmatpush1.msra.mxu0 0.0
    %1023 = vmatprep.subr.mxu0 0.0
    %1024 = vmatpush1.msra.mxu0 0.0
    %1025 = vmatprep.subr.mxu0 0.0
    %1026 = vmatpush1.msra.mxu0 0.0
    %1027 = vmatprep.subr.mxu0 0.0
    %1028 = vmatpush1.msra.mxu0 0.0
    %1029 = vmatprep.subr.mxu0 0.0
    %1030 = vmatpush1.msra.mxu0 0.0
    %1031 = vmatprep.subr.mxu0 0.0
    %1032 = vmatpush1.msra.mxu0 0.0
    %1033 = vmatprep.subr.mxu0 0.0
    %1034 = vmatpush1.msra.mxu0 0.0
    %1035 = vmatprep.subr.mxu0 0.0
    %1036 = vmatpush1.msra.mxu0 0.0
    %1037 = vmatprep.subr.mxu0 0.0
    %1038 = vmatpush1.msra.mxu0 0.0
    %1039 = vmatprep.mubr.f32.mxu0 0.0
    %1040 = vmatmul.mubr.f32.gmra.mrb[0].mxu0 %v947
    %v1041 = vpop.f32.mrb[0].mxu0
    %v1042 = vadd.f32 %v973, %v1041
    %v1043 = vpop.f32.mrb[0].mxu0
    %1044 = vmatprep.mubr.f32.mxu0 0.0
    %1045 = vmatmul.mubr.f32.gmra.mrb[0].mxu0 %v948
    %v1046 = vpop.f32.mrb[0].mxu0
    %v1047 = vadd.f32 %v973, %v1046
    %v1048 = vpop.f32.mrb[0].mxu0
    %1049 = vmatprep.mubr.f32.mxu0 0.0
    %1050 = vmatmul.mubr.f32.gmra.mrb[0].mxu0 %v949
    %v1051 = vpop.f32.mrb[0].mxu0
    %v1052 = vadd.f32 %v973, %v1051
    %v1053 = vpop.f32.mrb[0].mxu0
    %1054 = vdwg.mxu0
    %v1055 = vmax.f32 %v1042, 0.0
    %v1056 = vmax.f32 %v1047, 0.0
    %v1057 = vmax.f32 %v1052, 0.0
    %s1058 = scalar_lea.vmem [#allocation7], 128
    %v1059 = vld [vmem:[%s1058] sm:$0xff]
    %v1060 = vld [vmem:[%s1058 + $0x8] sm:$0xff]
    %v1061 = vld [vmem:[%s1058 + $0x10] sm:$0xff]
    %v1062 = vld [vmem:[%s1058 + $0x18] sm:$0xff]
    %v1063 = vld [vmem:[%s1058 + $0x20] sm:$0xff]
    %v1064 = vld [vmem:[%s1058 + $0x28] sm:$0xff]
    %v1065 = vld [vmem:[%s1058 + $0x30] sm:$0xff]
    %v1066 = vld [vmem:[%s1058 + $0x38] sm:$0xff]
    %v1067 = vld [vmem:[%s1058 + $0x40] sm:$0xff]
    %v1068 = vld [vmem:[%s1058 + $0x48] sm:$0xff]
    %v1069 = vld [vmem:[%s1058 + $0x50] sm:$0xff]
    %v1070 = vld [vmem:[%s1058 + $0x58] sm:$0xff]
    %v1071 = vld [vmem:[%s1058 + $0x60] sm:$0xff]
    %v1072 = vld [vmem:[%s1058 + $0x68] sm:$0xff]
    %v1073 = vld [vmem:[%s1058 + $0x70] sm:$0xff]
    %v1074 = vld [vmem:[%s1058 + $0x78] sm:$0xff]
    %s1075 = scalar_lea.vmem %s8, 1
    %v1076 = vld [vmem:[%s1075] sm:$0x1]
    %v1078 = vlaneseq
    %v1079 = vshrl.u32 %v1078, 7
    %v1080 = vsub.s32 0, %v1079
    %v1081 = vrot.slane %v1076, %v1080
    %1083 = vmatprep.subr.mxu0 0.0
    %1084 = vmatpush1.msra.mxu0 %v1059
    %1085 = vmatprep.subr.mxu0 0.0
    %1086 = vmatpush1.msra.mxu0 %v1060
    %1087 = vmatprep.subr.mxu0 0.0
    %1088 = vmatpush1.msra.mxu0 %v1061
    %1089 = vmatprep.subr.mxu0 0.0
    %1090 = vmatpush1.msra.mxu0 %v1062
    %1091 = vmatprep.subr.mxu0 0.0
    %1092 = vmatpush1.msra.mxu0 %v1063
    %1093 = vmatprep.subr.mxu0 0.0
    %1094 = vmatpush1.msra.mxu0 %v1064
    %1095 = vmatprep.subr.mxu0 0.0
    %1096 = vmatpush1.msra.mxu0 %v1065
    %1097 = vmatprep.subr.mxu0 0.0
    %1098 = vmatpush1.msra.mxu0 %v1066
    %1099 = vmatprep.subr.mxu0 0.0
    %1100 = vmatpush1.msra.mxu0 %v1067
    %1101 = vmatprep.subr.mxu0 0.0
    %1102 = vmatpush1.msra.mxu0 %v1068
    %1103 = vmatprep.subr.mxu0 0.0
    %1104 = vmatpush1.msra.mxu0 %v1069
    %1105 = vmatprep.subr.mxu0 0.0
    %1106 = vmatpush1.msra.mxu0 %v1070
    %1107 = vmatprep.subr.mxu0 0.0
    %1108 = vmatpush1.msra.mxu0 %v1071
    %1109 = vmatprep.subr.mxu0 0.0
    %1110 = vmatpush1.msra.mxu0 %v1072
    %1111 = vmatprep.subr.mxu0 0.0
    %1112 = vmatpush1.msra.mxu0 %v1073
    %1113 = vmatprep.subr.mxu0 0.0
    %1114 = vmatpush1.msra.mxu0 %v1074
    %1115 = vmatprep.subr.mxu0 0.0
    %1116 = vmatpush1.msra.mxu0 0.0
    %1117 = vmatprep.subr.mxu0 0.0
    %1118 = vmatpush1.msra.mxu0 0.0
    %1119 = vmatprep.subr.mxu0 0.0
    %1120 = vmatpush1.msra.mxu0 0.0
    %1121 = vmatprep.subr.mxu0 0.0
    %1122 = vmatpush1.msra.mxu0 0.0
    %1123 = vmatprep.subr.mxu0 0.0
    %1124 = vmatpush1.msra.mxu0 0.0
    %1125 = vmatprep.subr.mxu0 0.0
    %1126 = vmatpush1.msra.mxu0 0.0
    %1127 = vmatprep.subr.mxu0 0.0
    %1128 = vmatpush1.msra.mxu0 0.0
    %1129 = vmatprep.subr.mxu0 0.0
    %1130 = vmatpush1.msra.mxu0 0.0
    %1131 = vmatprep.subr.mxu0 0.0
    %1132 = vmatpush1.msra.mxu0 0.0
    %1133 = vmatprep.subr.mxu0 0.0
    %1134 = vmatpush1.msra.mxu0 0.0
    %1135 = vmatprep.subr.mxu0 0.0
    %1136 = vmatpush1.msra.mxu0 0.0
    %1137 = vmatprep.subr.mxu0 0.0
    %1138 = vmatpush1.msra.mxu0 0.0
    %1139 = vmatprep.subr.mxu0 0.0
    %1140 = vmatpush1.msra.mxu0 0.0
    %1141 = vmatprep.subr.mxu0 0.0
    %1142 = vmatpush1.msra.mxu0 0.0
    %1143 = vmatprep.subr.mxu0 0.0
    %1144 = vmatpush1.msra.mxu0 0.0
    %1145 = vmatprep.subr.mxu0 0.0
    %1146 = vmatpush1.msra.mxu0 0.0
    %1147 = vmatprep.mubr.f32.mxu0 0.0
    %1148 = vmatmul.mubr.f32.gmra.mrb[0].mxu0 %v1055
    %v1149 = vpop.f32.mrb[0].mxu0
    %v1150 = vadd.f32 %v1081, %v1149
    %v1151 = vpop.f32.mrb[0].mxu0
    %1152 = vmatprep.mubr.f32.mxu0 0.0
    %1153 = vmatmul.mubr.f32.gmra.mrb[0].mxu0 %v1056
    %v1154 = vpop.f32.mrb[0].mxu0
    %v1155 = vadd.f32 %v1081, %v1154
    %v1156 = vpop.f32.mrb[0].mxu0
    %1157 = vmatprep.mubr.f32.mxu0 0.0
    %1158 = vmatmul.mubr.f32.gmra.mrb[0].mxu0 %v1057
    %v1159 = vpop.f32.mrb[0].mxu0
    %v1160 = vadd.f32 %v1081, %v1159
    %v1161 = vpop.f32.mrb[0].mxu0
    %1162 = vdwg.mxu0
    %v1163 = vmax.f32 %v1150, 0.0
    %v1164 = vmax.f32 %v1155, 0.0
    %v1165 = vmax.f32 %v1160, 0.0
    %s1166 = scalar_lea.vmem %s9, 1
    %v1167 = vld [vmem:[%s1166] sm:$0x1]
    %v1169 = vlaneseq
    %v1170 = vshrl.u32 %v1169, 7
    %v1171 = vsub.s32 0, %v1170
    %v1172 = vrot.slane %v1167, %v1171
    %v1174 = vmul.f32 %v1163, %v1172
    %v1175 = vmul.f32 %v1164, %v1172
    %v1176 = vmul.f32 %v1165, %v1172
    %s1177 = scalar_lea.vmem %s10, 1
    %v1178 = vld [vmem:[%s1177] sm:$0x1]
    %v1180 = vlaneseq
    %v1181 = vshrl.u32 %v1180, 7
    %v1182 = vsub.s32 0, %v1181
    %v1183 = vrot.slane %v1178, %v1182
    %v1185 = vadd.f32 %v1174, %v1183
    %v1186 = vadd.f32 %v1175, %v1183
    %v1187 = vadd.f32 %v1176, %v1183
    %v1188 = vmax.f32 %v1185, 0.0
    %v1189 = vmax.f32 %v1186, 0.0
    %v1190 = vmax.f32 %v1187, 0.0
    %v1191 = vadd.f32 %v698, %v1188
    %v1192 = vadd.f32 %v699, %v1189
    %v1193 = vadd.f32 %v700, %v1190
    %1194 = vmatprep.subr.mxu0 0.0
    %1195 = vmatpush1.msra.mxu0 %v1191
    %1196 = vmatprep.subr.mxu0 0.0
    %1197 = vmatpush1.msra.mxu0 %v1192
    %1198 = vmatprep.subr.mxu0 0.0
    %1199 = vmatpush1.msra.mxu0 %v1193
    %1200 = vmatprep.subr.mxu0 0.0
    %1201 = vmatpush1.msra.mxu0 0.0
    %1202 = vmatprep.subr.mxu0 0.0
    %1203 = vmatpush1.msra.mxu0 0.0
    %1204 = vmatprep.subr.mxu0 0.0
    %1205 = vmatpush1.msra.mxu0 0.0
    %1206 = vmatprep.subr.mxu0 0.0
    %1207 = vmatpush1.msra.mxu0 0.0
    %1208 = vmatprep.subr.mxu0 0.0
    %1209 = vmatpush1.msra.mxu0 0.0
    %1210 = vmatprep.subr.mxu0 0.0
    %1211 = vmatpush1.msra.mxu0 0.0
    %1212 = vmatprep.subr.mxu0 0.0
    %1213 = vmatpush1.msra.mxu0 0.0
    %1214 = vmatprep.subr.mxu0 0.0
    %1215 = vmatpush1.msra.mxu0 0.0
    %1216 = vmatprep.subr.mxu0 0.0
    %1217 = vmatpush1.msra.mxu0 0.0
    %1218 = vmatprep.subr.mxu0 0.0
    %1219 = vmatpush1.msra.mxu0 0.0
    %1220 = vmatprep.subr.mxu0 0.0
    %1221 = vmatpush1.msra.mxu0 0.0
    %1222 = vmatprep.subr.mxu0 0.0
    %1223 = vmatpush1.msra.mxu0 0.0
    %1224 = vmatprep.subr.mxu0 0.0
    %1225 = vmatpush1.msra.mxu0 0.0
    %1226 = vmatprep.subr.mxu0 0.0
    %1227 = vmatpush1.msra.mxu0 0.0
    %1228 = vmatprep.subr.mxu0 0.0
    %1229 = vmatpush1.msra.mxu0 0.0
    %1230 = vmatprep.subr.mxu0 0.0
    %1231 = vmatpush1.msra.mxu0 0.0
    %1232 = vmatprep.subr.mxu0 0.0
    %1233 = vmatpush1.msra.mxu0 0.0
    %1234 = vmatprep.subr.mxu0 0.0
    %1235 = vmatpush1.msra.mxu0 0.0
    %1236 = vmatprep.subr.mxu0 0.0
    %1237 = vmatpush1.msra.mxu0 0.0
    %1238 = vmatprep.subr.mxu0 0.0
    %1239 = vmatpush1.msra.mxu0 0.0
    %1240 = vmatprep.subr.mxu0 0.0
    %1241 = vmatpush1.msra.mxu0 0.0
    %1242 = vmatprep.subr.mxu0 0.0
    %1243 = vmatpush1.msra.mxu0 0.0
    %1244 = vmatprep.subr.mxu0 0.0
    %1245 = vmatpush1.msra.mxu0 0.0
    %1246 = vmatprep.subr.mxu0 0.0
    %1247 = vmatpush1.msra.mxu0 0.0
    %1248 = vmatprep.subr.mxu0 0.0
    %1249 = vmatpush1.msra.mxu0 0.0
    %1250 = vmatprep.subr.mxu0 0.0
    %1251 = vmatpush1.msra.mxu0 0.0
    %1252 = vmatprep.subr.mxu0 0.0
    %1253 = vmatpush1.msra.mxu0 0.0
    %1254 = vmatprep.subr.mxu0 0.0
    %1255 = vmatpush1.msra.mxu0 0.0
    %1256 = vmatprep.subr.mxu0 0.0
    %1257 = vmatpush1.msra.mxu0 0.0
    %1258 = vmatprep.mubr.f32.mxu0 0.0
    %1259 = vmatmul.mubr.f32.gmra.mrb[0].mxu0 %v206
    %v1260 = vpop.f32.mrb[0].mxu0
    %v1261 = vadd.f32 0.0, %v1260
    %v1262 = vpop.f32.mrb[0].mxu0
    %1263 = vdwg.mxu0
    %s1264 = scalar_lea.vmem [#allocation8], 256
    %v1265 = vld [vmem:[%s1264] sm:$0xff]
    %v1266 = vld [vmem:[%s1264 + $0x8] sm:$0xff]
    %v1267 = vld [vmem:[%s1264 + $0x10] sm:$0xff]
    %v1268 = vld [vmem:[%s1264 + $0x18] sm:$0xff]
    %v1269 = vld [vmem:[%s1264 + $0x20] sm:$0xff]
    %v1270 = vld [vmem:[%s1264 + $0x28] sm:$0xff]
    %v1271 = vld [vmem:[%s1264 + $0x30] sm:$0xff]
    %v1272 = vld [vmem:[%s1264 + $0x38] sm:$0xff]
    %v1273 = vld [vmem:[%s1264 + $0x40] sm:$0xff]
    %v1274 = vld [vmem:[%s1264 + $0x48] sm:$0xff]
    %v1275 = vld [vmem:[%s1264 + $0x50] sm:$0xff]
    %v1276 = vld [vmem:[%s1264 + $0x58] sm:$0xff]
    %v1277 = vld [vmem:[%s1264 + $0x60] sm:$0xff]
    %v1278 = vld [vmem:[%s1264 + $0x68] sm:$0xff]
    %v1279 = vld [vmem:[%s1264 + $0x70] sm:$0xff]
    %v1280 = vld [vmem:[%s1264 + $0x78] sm:$0xff]
    %s1281 = scalar_lea.vmem %s12, 2
    %v1282 = vld [vmem:[%s1281] sm:$0x1]
    %v1284 = vlaneseq
    %v1285 = vshrl.u32 %v1284, 7
    %v1286 = vsub.s32 0, %v1285
    %v1287 = vrot.slane %v1282, %v1286
    %1289 = vmatprep.subr.mxu0 0.0
    %1290 = vmatpush1.msra.mxu0 %v1265
    %1291 = vmatprep.subr.mxu0 0.0
    %1292 = vmatpush1.msra.mxu0 %v1266
    %1293 = vmatprep.subr.mxu0 0.0
    %1294 = vmatpush1.msra.mxu0 %v1267
    %1295 = vmatprep.subr.mxu0 0.0
    %1296 = vmatpush1.msra.mxu0 %v1268
    %1297 = vmatprep.subr.mxu0 0.0
    %1298 = vmatpush1.msra.mxu0 %v1269
    %1299 = vmatprep.subr.mxu0 0.0
    %1300 = vmatpush1.msra.mxu0 %v1270
    %1301 = vmatprep.subr.mxu0 0.0
    %1302 = vmatpush1.msra.mxu0 %v1271
    %1303 = vmatprep.subr.mxu0 0.0
    %1304 = vmatpush1.msra.mxu0 %v1272
    %1305 = vmatprep.subr.mxu0 0.0
    %1306 = vmatpush1.msra.mxu0 %v1273
    %1307 = vmatprep.subr.mxu0 0.0
    %1308 = vmatpush1.msra.mxu0 %v1274
    %1309 = vmatprep.subr.mxu0 0.0
    %1310 = vmatpush1.msra.mxu0 %v1275
    %1311 = vmatprep.subr.mxu0 0.0
    %1312 = vmatpush1.msra.mxu0 %v1276
    %1313 = vmatprep.subr.mxu0 0.0
    %1314 = vmatpush1.msra.mxu0 %v1277
    %1315 = vmatprep.subr.mxu0 0.0
    %1316 = vmatpush1.msra.mxu0 %v1278
    %1317 = vmatprep.subr.mxu0 0.0
    %1318 = vmatpush1.msra.mxu0 %v1279
    %1319 = vmatprep.subr.mxu0 0.0
    %1320 = vmatpush1.msra.mxu0 %v1280
    %1321 = vmatprep.subr.mxu0 0.0
    %1322 = vmatpush1.msra.mxu0 0.0
    %1323 = vmatprep.subr.mxu0 0.0
    %1324 = vmatpush1.msra.mxu0 0.0
    %1325 = vmatprep.subr.mxu0 0.0
    %1326 = vmatpush1.msra.mxu0 0.0
    %1327 = vmatprep.subr.mxu0 0.0
    %1328 = vmatpush1.msra.mxu0 0.0
    %1329 = vmatprep.subr.mxu0 0.0
    %1330 = vmatpush1.msra.mxu0 0.0
    %1331 = vmatprep.subr.mxu0 0.0
    %1332 = vmatpush1.msra.mxu0 0.0
    %1333 = vmatprep.subr.mxu0 0.0
    %1334 = vmatpush1.msra.mxu0 0.0
    %1335 = vmatprep.subr.mxu0 0.0
    %1336 = vmatpush1.msra.mxu0 0.0
    %1337 = vmatprep.subr.mxu0 0.0
    %1338 = vmatpush1.msra.mxu0 0.0
    %1339 = vmatprep.subr.mxu0 0.0
    %1340 = vmatpush1.msra.mxu0 0.0
    %1341 = vmatprep.subr.mxu0 0.0
    %1342 = vmatpush1.msra.mxu0 0.0
    %1343 = vmatprep.subr.mxu0 0.0
    %1344 = vmatpush1.msra.mxu0 0.0
    %1345 = vmatprep.subr.mxu0 0.0
    %1346 = vmatpush1.msra.mxu0 0.0
    %1347 = vmatprep.subr.mxu0 0.0
    %1348 = vmatpush1.msra.mxu0 0.0
    %1349 = vmatprep.subr.mxu0 0.0
    %1350 = vmatpush1.msra.mxu0 0.0
    %1351 = vmatprep.subr.mxu0 0.0
    %1352 = vmatpush1.msra.mxu0 0.0
    %1353 = vmatprep.mubr.f32.mxu0 0.0
    %1354 = vmatmul.mubr.f32.gmra.mrb[0].mxu0 %v1261
    %v1355 = vpop.f32.mrb[0].mxu0
    %v1356 = vadd.f32 %v1287, %v1355
    %v1357 = vpop.f32.mrb[0].mxu0
    %1358 = vdwg.mxu0
    %v1359 = vadd.f32 %v866, %v1356
    %1360 = vst [vmem:[#allocation10] sm:$0xff] %v1359
    // Predicated region
    $region70: #{tpu_custom_call.1} parent=1 // pred_check
      _
    $region71: #{tpu_custom_call.1} parent=1 // pred_check_branch
      %1362 = sbr.rel (0) target = $region73
    $region72: #{tpu_custom_call.1} parent=1 // pred_region
      %s1364 = ssub.s32 128, 128
      %1365 = vsyncadd [#allocation4], %s1364
      %s1367 = sshll.u32 [#allocation10], 4
      %s1368 = int_to_ptr.vmem [resolvable:$true] %s1367
      %1370 = dma.vmem_to_hbm [thread:$0]  %s1368, 128, %s13, [#allocation4]
    $region73: #{tpu_custom_call.1} parent=1 // pred_fallthru
      _
    // Predicated region
    $region74: #{tpu_custom_call.1} parent=1 // pred_check
      _
    $region75: #{tpu_custom_call.1} parent=1 // pred_check_branch
      %1372 = sbr.rel (0) target = $region77
    $region76: #{tpu_custom_call.1} parent=1 // pred_region
      %1373 = dma.done [#allocation4], 128
    $region77: #{tpu_custom_call.1} parent=1 // pred_fallthru
      _
    %1374 = vsyncpa [#allocation3], 1
    %1375 = vsyncpa [#allocation6], 1
    %1376 = vsyncpa [#allocation9], 1
    %1377 = vsyncpa [#allocation4], 1

</llo_original>
